<compile_context>
chip_gen: v7x
topology: tpu7x:2x2x1
jax: 0.10.0
libtpu: 0.0.40
codegen_flags: <defaults>
</compile_context>

<pallas_src>
import functools

import jax
import jax.numpy as jnp
from jax.experimental import pallas as pl
from jax.experimental.pallas import tpu as pltpu


# ---------------------------------------------------------------------------
# Fused kernel: all LSTM layers + final Linear in one pallas_call
# ---------------------------------------------------------------------------
def _fused_lstm_linear_kernel(x_ref, wih_ref, whh_ref, b_ref, wlin_ref, blin_ref,
                              out_ref, *, T, D):
    """
    x_ref   : (B, T*D)   batch-major input; timestep t lives in lanes [t*D,(t+1)*D)
    wih_ref : (L, K, GW) input->gates weights; gate g in lanes [g*H,(g+1)*H)
                         (i/f/o columns pre-scaled by 0.5 - see pack_params)
    whh_ref : (L, H, GW) hidden->gates weights, same packed / pre-scaled layout
    b_ref   : (L, 1, GW) b_ih + b_hh, same packed / pre-scaled layout
    wlin_ref: (H, O)     final Linear weight (transposed)
    blin_ref: (1, O)     final Linear bias
    out_ref : (B, O)     output = Linear(h_last)  (== Linear(seq)[:, -1, :])
    """
    B = x_ref.shape[0]
    L, _, GW = wih_ref.shape
    H = whh_ref.shape[1]

    # Lane constants for the single-tanh activation blend (hoisted out of all loops).
    lane = jax.lax.broadcasted_iota(jnp.int32, (B, GW), 1)
    is_g = jnp.logical_and(lane >= 2 * H, lane < 3 * H)        # the tanh ("g") gate
    post_scale = jnp.where(is_g, 1.0, 0.5).astype(jnp.float32)
    post_off = jnp.where(is_g, 0.0, 0.5).astype(jnp.float32)

    x2d = x_ref[...]                                           # (B, T*D), one load

    hs = []
    h = jnp.zeros((B, H), jnp.float32)
    for l in range(L):                      # static layer loop (L = num_layers)
        d_in = D if l == 0 else H
        w_ih = wih_ref[l][:d_in, :]         # (d_in, GW)  hoisted per layer
        w_hh = whh_ref[l]                   # (H, GW)     hoisted per layer
        bias = jnp.broadcast_to(b_ref[l], (B, GW))             # hoisted broadcast

        # Hoisted input projections: independent of the recurrence, so the LLO
        # scheduler can overlap them with the serial h @ W_hh chain.
        if l == 0:
            xs = [x2d[:, t * D:(t + 1) * D] for t in range(T)]
        else:
            xs = hs
        gxs = [jnp.dot(xs[t], w_ih, preferred_element_type=jnp.float32) + bias
               for t in range(T)]

        h = jnp.zeros((B, H), jnp.float32)
        c = jnp.zeros((B, H), jnp.float32)
        hs = []
        for t in range(T):                  # fully unrolled (T small & static)
            gates = gxs[t] + jnp.dot(h, w_hh, preferred_element_type=jnp.float32)
            # ONE EUP pass: i/f/o lanes carry z/2 (weights pre-scaled), so
            # sigmoid(z) = 0.5*tanh(z/2) + 0.5 while the g lanes keep tanh(z).
            tg = jnp.tanh(gates)
            acts = tg * post_scale + post_off
            i_g = acts[:, 0 * H:1 * H]
            f_g = acts[:, 1 * H:2 * H]
            g_g = acts[:, 2 * H:3 * H]
            o_g = acts[:, 3 * H:4 * H]
            c = f_g * c + i_g * g_g
            h = o_g * jnp.tanh(c)
            if l + 1 < L:                   # last layer: only h at t = T-1 is needed
                hs.append(h)

    # Final Linear on the last hidden state only.
    out_ref[...] = (jnp.dot(h, wlin_ref[...], preferred_element_type=jnp.float32)
                    + blin_ref[...]).astype(out_ref.dtype)


# ---------------------------------------------------------------------------
# Wrapper (single launch; no transpose / pad / trailing slice)
# ---------------------------------------------------------------------------
@jax.jit
def model_forward(x_btd, kparams):
    """x_btd: (B, T, input_dim) batch_first, like the PyTorch module."""
    B, T, D = x_btd.shape
    O = kparams["wlin"].shape[1]
    # Contiguous merge of the trailing dims -> bitcast inside the jit; no extra
    # XLA op / HBM round trip in front of the kernel.
    x2d = x_btd.reshape(B, T * D)

    vmem_spec = lambda: pl.BlockSpec(memory_space=pltpu.MemorySpace.VMEM)
    return pl.pallas_call(
        functools.partial(_fused_lstm_linear_kernel, T=T, D=D),
        out_shape=jax.ShapeDtypeStruct((B, O), jnp.float32),
        in_specs=[vmem_spec() for _ in range(6)],
        out_specs=vmem_spec(),
        compiler_params=pltpu.CompilerParams(vmem_limit_bytes=16 * 1024 * 1024),
    )(x2d, kparams["wih"], kparams["whh"], kparams["b"],
      kparams["wlin"], kparams["blin"])


# ---------------------------------------------------------------------------
# Parameter init (PyTorch-style U(-1/sqrt(H), 1/sqrt(H))) and packing
# ---------------------------------------------------------------------------
def init_raw_params(key, input_dim, hidden_dim, output_dim):
    num_layers = output_dim  # third positional arg of nn.LSTM is num_layers
    bound = 1.0 / jnp.sqrt(hidden_dim)
    lstm = []
    for layer in range(num_layers):
        d_in = input_dim if layer == 0 else hidden_dim
        key, k1, k2, k3, k4 = jax.random.split(key, 5)
        w_ih = jax.random.uniform(k1, (4 * hidden_dim, d_in), jnp.float32, -bound, bound)
        w_hh = jax.random.uniform(k2, (4 * hidden_dim, hidden_dim), jnp.float32, -bound, bound)
        b_ih = jax.random.uniform(k3, (4 * hidden_dim,), jnp.float32, -bound, bound)
        b_hh = jax.random.uniform(k4, (4 * hidden_dim,), jnp.float32, -bound, bound)
        lstm.append((w_ih, w_hh, b_ih, b_hh))
    key, k5, k6 = jax.random.split(key, 3)
    lin_w = jax.random.uniform(k5, (output_dim, hidden_dim), jnp.float32, -bound, bound)
    lin_b = jax.random.uniform(k6, (output_dim,), jnp.float32, -bound, bound)
    return {"lstm": lstm, "lin_w": lin_w, "lin_b": lin_b}


def pack_params(raw, input_dim, hidden_dim, output_dim):
    """Pack weights into the kernel's single-pitch, pre-scaled gate layout (done once).

    Gate g (PyTorch order i, f, g, o) lives in lanes [g*H, (g+1)*H) of a GW-lane
    pitch (GW = 4*H rounded up to 128).  The i/f/o columns and bias are
    pre-scaled by 0.5 so the kernel evaluates all four gate activations with a
    single tanh: sigmoid(z) = 0.5*(tanh(z/2)+1).
    """
    H = hidden_dim
    GW = max(128, ((4 * H + 127) // 128) * 128)
    K = max(input_dim, H)
    wih_s, whh_s, b_s = [], [], []
    for (w_ih, w_hh, b_ih, b_hh) in raw["lstm"]:
        d_in = w_ih.shape[1]
        wih_t = jnp.zeros((K, GW), jnp.float32)
        whh_t = jnp.zeros((H, GW), jnp.float32)
        bias = jnp.zeros((1, GW), jnp.float32)
        for g in range(4):  # PyTorch gate order: i, f, g, o
            s = 1.0 if g == 2 else 0.5      # pre-scale sigmoid gates (tanh trick)
            wih_t = wih_t.at[:d_in, g * H:(g + 1) * H].set(s * w_ih[g * H:(g + 1) * H, :].T)
            whh_t = whh_t.at[:, g * H:(g + 1) * H].set(s * w_hh[g * H:(g + 1) * H, :].T)
            bias = bias.at[0, g * H:(g + 1) * H].set(
                s * (b_ih[g * H:(g + 1) * H] + b_hh[g * H:(g + 1) * H]))
        wih_s.append(wih_t)
        whh_s.append(whh_t)
        b_s.append(bias)
    return {
        "wih": jnp.stack(wih_s),                                  # (L, K, GW)
        "whh": jnp.stack(whh_s),                                  # (L, H, GW)
        "b": jnp.stack(b_s),                                      # (L, 1, GW)
        "wlin": raw["lin_w"].T.astype(jnp.float32),               # (H, O)
        "blin": raw["lin_b"].reshape(1, -1).astype(jnp.float32),  # (1, O)
    }


# ---------------------------------------------------------------------------
# Pure-JAX reference (sanity check against the fused kernel)
# ---------------------------------------------------------------------------
def reference_forward(x_btd, raw):
    B, T, _ = x_btd.shape
    x = x_btd
    for (w_ih, w_hh, b_ih, b_hh) in raw["lstm"]:
        H = w_hh.shape[1]
        h = jnp.zeros((B, H), jnp.float32)
        c = jnp.zeros((B, H), jnp.float32)
        outs = []
        for t in range(T):
            gates = x[:, t, :] @ w_ih.T + h @ w_hh.T + b_ih + b_hh
            i = jax.nn.sigmoid(gates[:, 0 * H:1 * H])
            f = jax.nn.sigmoid(gates[:, 1 * H:2 * H])
            g = jnp.tanh(gates[:, 2 * H:3 * H])
            o = jax.nn.sigmoid(gates[:, 3 * H:4 * H])
            c = f * c + i * g
            h = o * jnp.tanh(c)
            outs.append(h)
        x = jnp.stack(outs, axis=1)
    return x[:, -1, :] @ raw["lin_w"].T + raw["lin_b"]


# ---------------------------------------------------------------------------
if __name__ == "__main__":
    # Shapes implied by `inputs = torch.randn(4, 6, 2)`: B=4, T=6, input_dim=2.
    B, T = 4, 6
    input_dim, hidden_dim, output_dim = 2, 8, 2   # output_dim doubles as num_layers

    key = jax.random.PRNGKey(0)
    key, kx, kp = jax.random.split(key, 3)
    x = jax.random.normal(kx, (B, T, input_dim), jnp.float32)

    raw = init_raw_params(kp, input_dim, hidden_dim, output_dim)
    kparams = pack_params(raw, input_dim, hidden_dim, output_dim)

    out = model_forward(x, kparams)
    out = jax.block_until_ready(out)

    ref = reference_forward(x, raw)
    assert out.shape == (B, output_dim)
    assert jnp.allclose(out, ref, atol=1e-4, rtol=1e-4), "Pallas output mismatch vs reference"

    print("KERNEL_OK")
</pallas_src>

<mosaic_0001>
module attributes {stable_mosaic.version = 11 : i64} {
  func.func @_fused_lstm_linear_kernel(%arg0: memref<4x12xf32, #tpu.memory_space<vmem>>, %arg1: memref<2x8x128xf32, #tpu.memory_space<vmem>>, %arg2: memref<2x8x128xf32, #tpu.memory_space<vmem>>, %arg3: memref<2x1x128xf32, #tpu.memory_space<vmem>>, %arg4: memref<8x2xf32, #tpu.memory_space<vmem>>, %arg5: memref<1x2xf32, #tpu.memory_space<vmem>>, %arg6: memref<4x2xf32, #tpu.memory_space<vmem>>) attributes {dimension_semantics = [], scalar_prefetch = 0 : i64, scratch_operands = 0 : i64, tpu.core_type = #tpu.core_type<tc>} {
    %0 = tpu.iota {dimensions = array<i32: 1>} : vector<4x128xi32>
    %c16_i32 = arith.constant 16 : i32
    %1 = vector.broadcast %c16_i32 : i32 to vector<4x128xi32>
    %2 = arith.cmpi sge, %0, %1 : vector<4x128xi32>
    %c24_i32 = arith.constant 24 : i32
    %3 = vector.broadcast %c24_i32 : i32 to vector<4x128xi32>
    %4 = arith.cmpi slt, %0, %3 : vector<4x128xi32>
    %5 = arith.andi %2, %4 : vector<4x128xi1>
    %cst = arith.constant 1.000000e+00 : f32
    %cst_0 = arith.constant 5.000000e-01 : f32
    %6 = vector.broadcast %cst : f32 to vector<4x128xf32>
    %7 = vector.broadcast %cst_0 : f32 to vector<4x128xf32>
    %8 = arith.select %5, %6, %7 : vector<4x128xi1>, vector<4x128xf32>
    %cst_1 = arith.constant 0.000000e+00 : f32
    %cst_2 = arith.constant 5.000000e-01 : f32
    %9 = vector.broadcast %cst_1 : f32 to vector<4x128xf32>
    %10 = vector.broadcast %cst_2 : f32 to vector<4x128xf32>
    %11 = arith.select %5, %9, %10 : vector<4x128xi1>, vector<4x128xf32>
    %c0 = arith.constant 0 : index
    %c0_3 = arith.constant 0 : index
    %12 = vector.load %arg0[%c0, %c0_3] : memref<4x12xf32, #tpu.memory_space<vmem>>, vector<4x12xf32>
    %c0_4 = arith.constant 0 : index
    %c0_5 = arith.constant 0 : index
    %c0_6 = arith.constant 0 : index
    %13 = vector.load %arg1[%c0_4, %c0_5, %c0_6] : memref<2x8x128xf32, #tpu.memory_space<vmem>>, vector<1x8x128xf32>
    %14 = vector.shape_cast %13 : vector<1x8x128xf32> to vector<8x128xf32>
    %15 = vector.extract_strided_slice %14 {offsets = [0, 0], sizes = [2, 128], strides = [1, 1]} : vector<8x128xf32> to vector<2x128xf32>
    %c0_7 = arith.constant 0 : index
    %c0_8 = arith.constant 0 : index
    %c0_9 = arith.constant 0 : index
    %16 = vector.load %arg2[%c0_7, %c0_8, %c0_9] : memref<2x8x128xf32, #tpu.memory_space<vmem>>, vector<1x8x128xf32>
    %17 = vector.shape_cast %16 : vector<1x8x128xf32> to vector<8x128xf32>
    %c0_10 = arith.constant 0 : index
    %c0_11 = arith.constant 0 : index
    %c0_12 = arith.constant 0 : index
    %18 = vector.load %arg3[%c0_10, %c0_11, %c0_12] : memref<2x1x128xf32, #tpu.memory_space<vmem>>, vector<1x1x128xf32>
    %19 = vector.shape_cast %18 : vector<1x1x128xf32> to vector<1x128xf32>
    %20 = vector.shape_cast %19 : vector<1x128xf32> to vector<1x128xf32>
    %21 = vector.broadcast %20 : vector<1x128xf32> to vector<4x128xf32>
    %22 = vector.extract_strided_slice %12 {offsets = [0, 0], sizes = [4, 2], strides = [1, 1]} : vector<4x12xf32> to vector<4x2xf32>
    %23 = vector.extract_strided_slice %12 {offsets = [0, 2], sizes = [4, 2], strides = [1, 1]} : vector<4x12xf32> to vector<4x2xf32>
    %24 = vector.extract_strided_slice %12 {offsets = [0, 4], sizes = [4, 2], strides = [1, 1]} : vector<4x12xf32> to vector<4x2xf32>
    %25 = vector.extract_strided_slice %12 {offsets = [0, 6], sizes = [4, 2], strides = [1, 1]} : vector<4x12xf32> to vector<4x2xf32>
    %26 = vector.extract_strided_slice %12 {offsets = [0, 8], sizes = [4, 2], strides = [1, 1]} : vector<4x12xf32> to vector<4x2xf32>
    %27 = vector.extract_strided_slice %12 {offsets = [0, 10], sizes = [4, 2], strides = [1, 1]} : vector<4x12xf32> to vector<4x2xf32>
    %cst_13 = arith.constant dense<0.000000e+00> : vector<4x128xf32>
    %28 = tpu.matmul %22, %15, %cst_13 {dimension_numbers = #tpu.dot_dimension_numbers<[1], [0], [0], [1], [0, 0, 1, 1], [], []>} : vector<4x2xf32>, vector<2x128xf32>, vector<4x128xf32> -> vector<4x128xf32>
    %29 = arith.addf %28, %21 : vector<4x128xf32>
    %cst_14 = arith.constant dense<0.000000e+00> : vector<4x128xf32>
    %30 = tpu.matmul %23, %15, %cst_14 {dimension_numbers = #tpu.dot_dimension_numbers<[1], [0], [0], [1], [0, 0, 1, 1], [], []>} : vector<4x2xf32>, vector<2x128xf32>, vector<4x128xf32> -> vector<4x128xf32>
    %31 = arith.addf %30, %21 : vector<4x128xf32>
    %cst_15 = arith.constant dense<0.000000e+00> : vector<4x128xf32>
    %32 = tpu.matmul %24, %15, %cst_15 {dimension_numbers = #tpu.dot_dimension_numbers<[1], [0], [0], [1], [0, 0, 1, 1], [], []>} : vector<4x2xf32>, vector<2x128xf32>, vector<4x128xf32> -> vector<4x128xf32>
    %33 = arith.addf %32, %21 : vector<4x128xf32>
    %cst_16 = arith.constant dense<0.000000e+00> : vector<4x128xf32>
    %34 = tpu.matmul %25, %15, %cst_16 {dimension_numbers = #tpu.dot_dimension_numbers<[1], [0], [0], [1], [0, 0, 1, 1], [], []>} : vector<4x2xf32>, vector<2x128xf32>, vector<4x128xf32> -> vector<4x128xf32>
    %35 = arith.addf %34, %21 : vector<4x128xf32>
    %cst_17 = arith.constant dense<0.000000e+00> : vector<4x128xf32>
    %36 = tpu.matmul %26, %15, %cst_17 {dimension_numbers = #tpu.dot_dimension_numbers<[1], [0], [0], [1], [0, 0, 1, 1], [], []>} : vector<4x2xf32>, vector<2x128xf32>, vector<4x128xf32> -> vector<4x128xf32>
    %37 = arith.addf %36, %21 : vector<4x128xf32>
    %cst_18 = arith.constant dense<0.000000e+00> : vector<4x128xf32>
    %38 = tpu.matmul %27, %15, %cst_18 {dimension_numbers = #tpu.dot_dimension_numbers<[1], [0], [0], [1], [0, 0, 1, 1], [], []>} : vector<4x2xf32>, vector<2x128xf32>, vector<4x128xf32> -> vector<4x128xf32>
    %39 = arith.addf %38, %21 : vector<4x128xf32>
    %cst_19 = arith.constant 0.000000e+00 : f32
    %40 = vector.broadcast %cst_19 : f32 to vector<4x8xf32>
    %cst_20 = arith.constant 0.000000e+00 : f32
    %41 = vector.broadcast %cst_20 : f32 to vector<4x8xf32>
    %cst_21 = arith.constant dense<0.000000e+00> : vector<4x128xf32>
    %42 = tpu.matmul %40, %17, %cst_21 {dimension_numbers = #tpu.dot_dimension_numbers<[1], [0], [0], [1], [0, 0, 1, 1], [], []>} : vector<4x8xf32>, vector<8x128xf32>, vector<4x128xf32> -> vector<4x128xf32>
    %43 = arith.addf %29, %42 : vector<4x128xf32>
    %44 = math.tanh %43 : vector<4x128xf32>
    %45 = arith.mulf %44, %8 : vector<4x128xf32>
    %46 = arith.addf %45, %11 : vector<4x128xf32>
    %47 = vector.extract_strided_slice %46 {offsets = [0, 0], sizes = [4, 8], strides = [1, 1]} : vector<4x128xf32> to vector<4x8xf32>
    %48 = vector.extract_strided_slice %46 {offsets = [0, 8], sizes = [4, 8], strides = [1, 1]} : vector<4x128xf32> to vector<4x8xf32>
    %49 = vector.extract_strided_slice %46 {offsets = [0, 16], sizes = [4, 8], strides = [1, 1]} : vector<4x128xf32> to vector<4x8xf32>
    %50 = vector.extract_strided_slice %46 {offsets = [0, 24], sizes = [4, 8], strides = [1, 1]} : vector<4x128xf32> to vector<4x8xf32>
    %51 = arith.mulf %48, %41 : vector<4x8xf32>
    %52 = arith.mulf %47, %49 : vector<4x8xf32>
    %53 = arith.addf %51, %52 : vector<4x8xf32>
    %54 = math.tanh %53 : vector<4x8xf32>
    %55 = arith.mulf %50, %54 : vector<4x8xf32>
    %cst_22 = arith.constant dense<0.000000e+00> : vector<4x128xf32>
    %56 = tpu.matmul %55, %17, %cst_22 {dimension_numbers = #tpu.dot_dimension_numbers<[1], [0], [0], [1], [0, 0, 1, 1], [], []>} : vector<4x8xf32>, vector<8x128xf32>, vector<4x128xf32> -> vector<4x128xf32>
    %57 = arith.addf %31, %56 : vector<4x128xf32>
    %58 = math.tanh %57 : vector<4x128xf32>
    %59 = arith.mulf %58, %8 : vector<4x128xf32>
    %60 = arith.addf %59, %11 : vector<4x128xf32>
    %61 = vector.extract_strided_slice %60 {offsets = [0, 0], sizes = [4, 8], strides = [1, 1]} : vector<4x128xf32> to vector<4x8xf32>
    %62 = vector.extract_strided_slice %60 {offsets = [0, 8], sizes = [4, 8], strides = [1, 1]} : vector<4x128xf32> to vector<4x8xf32>
    %63 = vector.extract_strided_slice %60 {offsets = [0, 16], sizes = [4, 8], strides = [1, 1]} : vector<4x128xf32> to vector<4x8xf32>
    %64 = vector.extract_strided_slice %60 {offsets = [0, 24], sizes = [4, 8], strides = [1, 1]} : vector<4x128xf32> to vector<4x8xf32>
    %65 = arith.mulf %62, %53 : vector<4x8xf32>
    %66 = arith.mulf %61, %63 : vector<4x8xf32>
    %67 = arith.addf %65, %66 : vector<4x8xf32>
    %68 = math.tanh %67 : vector<4x8xf32>
    %69 = arith.mulf %64, %68 : vector<4x8xf32>
    %cst_23 = arith.constant dense<0.000000e+00> : vector<4x128xf32>
    %70 = tpu.matmul %69, %17, %cst_23 {dimension_numbers = #tpu.dot_dimension_numbers<[1], [0], [0], [1], [0, 0, 1, 1], [], []>} : vector<4x8xf32>, vector<8x128xf32>, vector<4x128xf32> -> vector<4x128xf32>
    %71 = arith.addf %33, %70 : vector<4x128xf32>
    %72 = math.tanh %71 : vector<4x128xf32>
    %73 = arith.mulf %72, %8 : vector<4x128xf32>
    %74 = arith.addf %73, %11 : vector<4x128xf32>
    %75 = vector.extract_strided_slice %74 {offsets = [0, 0], sizes = [4, 8], strides = [1, 1]} : vector<4x128xf32> to vector<4x8xf32>
    %76 = vector.extract_strided_slice %74 {offsets = [0, 8], sizes = [4, 8], strides = [1, 1]} : vector<4x128xf32> to vector<4x8xf32>
    %77 = vector.extract_strided_slice %74 {offsets = [0, 16], sizes = [4, 8], strides = [1, 1]} : vector<4x128xf32> to vector<4x8xf32>
    %78 = vector.extract_strided_slice %74 {offsets = [0, 24], sizes = [4, 8], strides = [1, 1]} : vector<4x128xf32> to vector<4x8xf32>
    %79 = arith.mulf %76, %67 : vector<4x8xf32>
    %80 = arith.mulf %75, %77 : vector<4x8xf32>
    %81 = arith.addf %79, %80 : vector<4x8xf32>
    %82 = math.tanh %81 : vector<4x8xf32>
    %83 = arith.mulf %78, %82 : vector<4x8xf32>
    %cst_24 = arith.constant dense<0.000000e+00> : vector<4x128xf32>
    %84 = tpu.matmul %83, %17, %cst_24 {dimension_numbers = #tpu.dot_dimension_numbers<[1], [0], [0], [1], [0, 0, 1, 1], [], []>} : vector<4x8xf32>, vector<8x128xf32>, vector<4x128xf32> -> vector<4x128xf32>
    %85 = arith.addf %35, %84 : vector<4x128xf32>
    %86 = math.tanh %85 : vector<4x128xf32>
    %87 = arith.mulf %86, %8 : vector<4x128xf32>
    %88 = arith.addf %87, %11 : vector<4x128xf32>
    %89 = vector.extract_strided_slice %88 {offsets = [0, 0], sizes = [4, 8], strides = [1, 1]} : vector<4x128xf32> to vector<4x8xf32>
    %90 = vector.extract_strided_slice %88 {offsets = [0, 8], sizes = [4, 8], strides = [1, 1]} : vector<4x128xf32> to vector<4x8xf32>
    %91 = vector.extract_strided_slice %88 {offsets = [0, 16], sizes = [4, 8], strides = [1, 1]} : vector<4x128xf32> to vector<4x8xf32>
    %92 = vector.extract_strided_slice %88 {offsets = [0, 24], sizes = [4, 8], strides = [1, 1]} : vector<4x128xf32> to vector<4x8xf32>
    %93 = arith.mulf %90, %81 : vector<4x8xf32>
    %94 = arith.mulf %89, %91 : vector<4x8xf32>
    %95 = arith.addf %93, %94 : vector<4x8xf32>
    %96 = math.tanh %95 : vector<4x8xf32>
    %97 = arith.mulf %92, %96 : vector<4x8xf32>
    %cst_25 = arith.constant dense<0.000000e+00> : vector<4x128xf32>
    %98 = tpu.matmul %97, %17, %cst_25 {dimension_numbers = #tpu.dot_dimension_numbers<[1], [0], [0], [1], [0, 0, 1, 1], [], []>} : vector<4x8xf32>, vector<8x128xf32>, vector<4x128xf32> -> vector<4x128xf32>
    %99 = arith.addf %37, %98 : vector<4x128xf32>
    %100 = math.tanh %99 : vector<4x128xf32>
    %101 = arith.mulf %100, %8 : vector<4x128xf32>
    %102 = arith.addf %101, %11 : vector<4x128xf32>
    %103 = vector.extract_strided_slice %102 {offsets = [0, 0], sizes = [4, 8], strides = [1, 1]} : vector<4x128xf32> to vector<4x8xf32>
    %104 = vector.extract_strided_slice %102 {offsets = [0, 8], sizes = [4, 8], strides = [1, 1]} : vector<4x128xf32> to vector<4x8xf32>
    %105 = vector.extract_strided_slice %102 {offsets = [0, 16], sizes = [4, 8], strides = [1, 1]} : vector<4x128xf32> to vector<4x8xf32>
    %106 = vector.extract_strided_slice %102 {offsets = [0, 24], sizes = [4, 8], strides = [1, 1]} : vector<4x128xf32> to vector<4x8xf32>
    %107 = arith.mulf %104, %95 : vector<4x8xf32>
    %108 = arith.mulf %103, %105 : vector<4x8xf32>
    %109 = arith.addf %107, %108 : vector<4x8xf32>
    %110 = math.tanh %109 : vector<4x8xf32>
    %111 = arith.mulf %106, %110 : vector<4x8xf32>
    %cst_26 = arith.constant dense<0.000000e+00> : vector<4x128xf32>
    %112 = tpu.matmul %111, %17, %cst_26 {dimension_numbers = #tpu.dot_dimension_numbers<[1], [0], [0], [1], [0, 0, 1, 1], [], []>} : vector<4x8xf32>, vector<8x128xf32>, vector<4x128xf32> -> vector<4x128xf32>
    %113 = arith.addf %39, %112 : vector<4x128xf32>
    %114 = math.tanh %113 : vector<4x128xf32>
    %115 = arith.mulf %114, %8 : vector<4x128xf32>
    %116 = arith.addf %115, %11 : vector<4x128xf32>
    %117 = vector.extract_strided_slice %116 {offsets = [0, 0], sizes = [4, 8], strides = [1, 1]} : vector<4x128xf32> to vector<4x8xf32>
    %118 = vector.extract_strided_slice %116 {offsets = [0, 8], sizes = [4, 8], strides = [1, 1]} : vector<4x128xf32> to vector<4x8xf32>
    %119 = vector.extract_strided_slice %116 {offsets = [0, 16], sizes = [4, 8], strides = [1, 1]} : vector<4x128xf32> to vector<4x8xf32>
    %120 = vector.extract_strided_slice %116 {offsets = [0, 24], sizes = [4, 8], strides = [1, 1]} : vector<4x128xf32> to vector<4x8xf32>
    %121 = arith.mulf %118, %109 : vector<4x8xf32>
    %122 = arith.mulf %117, %119 : vector<4x8xf32>
    %123 = arith.addf %121, %122 : vector<4x8xf32>
    %124 = math.tanh %123 : vector<4x8xf32>
    %125 = arith.mulf %120, %124 : vector<4x8xf32>
    %c1 = arith.constant 1 : index
    %c0_27 = arith.constant 0 : index
    %c0_28 = arith.constant 0 : index
    %126 = vector.load %arg1[%c1, %c0_27, %c0_28] : memref<2x8x128xf32, #tpu.memory_space<vmem>>, vector<1x8x128xf32>
    %127 = vector.shape_cast %126 : vector<1x8x128xf32> to vector<8x128xf32>
    %c1_29 = arith.constant 1 : index
    %c0_30 = arith.constant 0 : index
    %c0_31 = arith.constant 0 : index
    %128 = vector.load %arg2[%c1_29, %c0_30, %c0_31] : memref<2x8x128xf32, #tpu.memory_space<vmem>>, vector<1x8x128xf32>
    %129 = vector.shape_cast %128 : vector<1x8x128xf32> to vector<8x128xf32>
    %c1_32 = arith.constant 1 : index
    %c0_33 = arith.constant 0 : index
    %c0_34 = arith.constant 0 : index
    %130 = vector.load %arg3[%c1_32, %c0_33, %c0_34] : memref<2x1x128xf32, #tpu.memory_space<vmem>>, vector<1x1x128xf32>
    %131 = vector.shape_cast %130 : vector<1x1x128xf32> to vector<1x128xf32>
    %132 = vector.shape_cast %131 : vector<1x128xf32> to vector<1x128xf32>
    %133 = vector.broadcast %132 : vector<1x128xf32> to vector<4x128xf32>
    %cst_35 = arith.constant dense<0.000000e+00> : vector<4x128xf32>
    %134 = tpu.matmul %55, %127, %cst_35 {dimension_numbers = #tpu.dot_dimension_numbers<[1], [0], [0], [1], [0, 0, 1, 1], [], []>} : vector<4x8xf32>, vector<8x128xf32>, vector<4x128xf32> -> vector<4x128xf32>
    %135 = arith.addf %134, %133 : vector<4x128xf32>
    %cst_36 = arith.constant dense<0.000000e+00> : vector<4x128xf32>
    %136 = tpu.matmul %69, %127, %cst_36 {dimension_numbers = #tpu.dot_dimension_numbers<[1], [0], [0], [1], [0, 0, 1, 1], [], []>} : vector<4x8xf32>, vector<8x128xf32>, vector<4x128xf32> -> vector<4x128xf32>
    %137 = arith.addf %136, %133 : vector<4x128xf32>
    %cst_37 = arith.constant dense<0.000000e+00> : vector<4x128xf32>
    %138 = tpu.matmul %83, %127, %cst_37 {dimension_numbers = #tpu.dot_dimension_numbers<[1], [0], [0], [1], [0, 0, 1, 1], [], []>} : vector<4x8xf32>, vector<8x128xf32>, vector<4x128xf32> -> vector<4x128xf32>
    %139 = arith.addf %138, %133 : vector<4x128xf32>
    %cst_38 = arith.constant dense<0.000000e+00> : vector<4x128xf32>
    %140 = tpu.matmul %97, %127, %cst_38 {dimension_numbers = #tpu.dot_dimension_numbers<[1], [0], [0], [1], [0, 0, 1, 1], [], []>} : vector<4x8xf32>, vector<8x128xf32>, vector<4x128xf32> -> vector<4x128xf32>
    %141 = arith.addf %140, %133 : vector<4x128xf32>
    %cst_39 = arith.constant dense<0.000000e+00> : vector<4x128xf32>
    %142 = tpu.matmul %111, %127, %cst_39 {dimension_numbers = #tpu.dot_dimension_numbers<[1], [0], [0], [1], [0, 0, 1, 1], [], []>} : vector<4x8xf32>, vector<8x128xf32>, vector<4x128xf32> -> vector<4x128xf32>
    %143 = arith.addf %142, %133 : vector<4x128xf32>
    %cst_40 = arith.constant dense<0.000000e+00> : vector<4x128xf32>
    %144 = tpu.matmul %125, %127, %cst_40 {dimension_numbers = #tpu.dot_dimension_numbers<[1], [0], [0], [1], [0, 0, 1, 1], [], []>} : vector<4x8xf32>, vector<8x128xf32>, vector<4x128xf32> -> vector<4x128xf32>
    %145 = arith.addf %144, %133 : vector<4x128xf32>
    %cst_41 = arith.constant 0.000000e+00 : f32
    %146 = vector.broadcast %cst_41 : f32 to vector<4x8xf32>
    %cst_42 = arith.constant 0.000000e+00 : f32
    %147 = vector.broadcast %cst_42 : f32 to vector<4x8xf32>
    %cst_43 = arith.constant dense<0.000000e+00> : vector<4x128xf32>
    %148 = tpu.matmul %146, %129, %cst_43 {dimension_numbers = #tpu.dot_dimension_numbers<[1], [0], [0], [1], [0, 0, 1, 1], [], []>} : vector<4x8xf32>, vector<8x128xf32>, vector<4x128xf32> -> vector<4x128xf32>
    %149 = arith.addf %135, %148 : vector<4x128xf32>
    %150 = math.tanh %149 : vector<4x128xf32>
    %151 = arith.mulf %150, %8 : vector<4x128xf32>
    %152 = arith.addf %151, %11 : vector<4x128xf32>
    %153 = vector.extract_strided_slice %152 {offsets = [0, 0], sizes = [4, 8], strides = [1, 1]} : vector<4x128xf32> to vector<4x8xf32>
    %154 = vector.extract_strided_slice %152 {offsets = [0, 8], sizes = [4, 8], strides = [1, 1]} : vector<4x128xf32> to vector<4x8xf32>
    %155 = vector.extract_strided_slice %152 {offsets = [0, 16], sizes = [4, 8], strides = [1, 1]} : vector<4x128xf32> to vector<4x8xf32>
    %156 = vector.extract_strided_slice %152 {offsets = [0, 24], sizes = [4, 8], strides = [1, 1]} : vector<4x128xf32> to vector<4x8xf32>
    %157 = arith.mulf %154, %147 : vector<4x8xf32>
    %158 = arith.mulf %153, %155 : vector<4x8xf32>
    %159 = arith.addf %157, %158 : vector<4x8xf32>
    %160 = math.tanh %159 : vector<4x8xf32>
    %161 = arith.mulf %156, %160 : vector<4x8xf32>
    %cst_44 = arith.constant dense<0.000000e+00> : vector<4x128xf32>
    %162 = tpu.matmul %161, %129, %cst_44 {dimension_numbers = #tpu.dot_dimension_numbers<[1], [0], [0], [1], [0, 0, 1, 1], [], []>} : vector<4x8xf32>, vector<8x128xf32>, vector<4x128xf32> -> vector<4x128xf32>
    %163 = arith.addf %137, %162 : vector<4x128xf32>
    %164 = math.tanh %163 : vector<4x128xf32>
    %165 = arith.mulf %164, %8 : vector<4x128xf32>
    %166 = arith.addf %165, %11 : vector<4x128xf32>
    %167 = vector.extract_strided_slice %166 {offsets = [0, 0], sizes = [4, 8], strides = [1, 1]} : vector<4x128xf32> to vector<4x8xf32>
    %168 = vector.extract_strided_slice %166 {offsets = [0, 8], sizes = [4, 8], strides = [1, 1]} : vector<4x128xf32> to vector<4x8xf32>
    %169 = vector.extract_strided_slice %166 {offsets = [0, 16], sizes = [4, 8], strides = [1, 1]} : vector<4x128xf32> to vector<4x8xf32>
    %170 = vector.extract_strided_slice %166 {offsets = [0, 24], sizes = [4, 8], strides = [1, 1]} : vector<4x128xf32> to vector<4x8xf32>
    %171 = arith.mulf %168, %159 : vector<4x8xf32>
    %172 = arith.mulf %167, %169 : vector<4x8xf32>
    %173 = arith.addf %171, %172 : vector<4x8xf32>
    %174 = math.tanh %173 : vector<4x8xf32>
    %175 = arith.mulf %170, %174 : vector<4x8xf32>
    %cst_45 = arith.constant dense<0.000000e+00> : vector<4x128xf32>
    %176 = tpu.matmul %175, %129, %cst_45 {dimension_numbers = #tpu.dot_dimension_numbers<[1], [0], [0], [1], [0, 0, 1, 1], [], []>} : vector<4x8xf32>, vector<8x128xf32>, vector<4x128xf32> -> vector<4x128xf32>
    %177 = arith.addf %139, %176 : vector<4x128xf32>
    %178 = math.tanh %177 : vector<4x128xf32>
    %179 = arith.mulf %178, %8 : vector<4x128xf32>
    %180 = arith.addf %179, %11 : vector<4x128xf32>
    %181 = vector.extract_strided_slice %180 {offsets = [0, 0], sizes = [4, 8], strides = [1, 1]} : vector<4x128xf32> to vector<4x8xf32>
    %182 = vector.extract_strided_slice %180 {offsets = [0, 8], sizes = [4, 8], strides = [1, 1]} : vector<4x128xf32> to vector<4x8xf32>
    %183 = vector.extract_strided_slice %180 {offsets = [0, 16], sizes = [4, 8], strides = [1, 1]} : vector<4x128xf32> to vector<4x8xf32>
    %184 = vector.extract_strided_slice %180 {offsets = [0, 24], sizes = [4, 8], strides = [1, 1]} : vector<4x128xf32> to vector<4x8xf32>
    %185 = arith.mulf %182, %173 : vector<4x8xf32>
    %186 = arith.mulf %181, %183 : vector<4x8xf32>
    %187 = arith.addf %185, %186 : vector<4x8xf32>
    %188 = math.tanh %187 : vector<4x8xf32>
    %189 = arith.mulf %184, %188 : vector<4x8xf32>
    %cst_46 = arith.constant dense<0.000000e+00> : vector<4x128xf32>
    %190 = tpu.matmul %189, %129, %cst_46 {dimension_numbers = #tpu.dot_dimension_numbers<[1], [0], [0], [1], [0, 0, 1, 1], [], []>} : vector<4x8xf32>, vector<8x128xf32>, vector<4x128xf32> -> vector<4x128xf32>
    %191 = arith.addf %141, %190 : vector<4x128xf32>
    %192 = math.tanh %191 : vector<4x128xf32>
    %193 = arith.mulf %192, %8 : vector<4x128xf32>
    %194 = arith.addf %193, %11 : vector<4x128xf32>
    %195 = vector.extract_strided_slice %194 {offsets = [0, 0], sizes = [4, 8], strides = [1, 1]} : vector<4x128xf32> to vector<4x8xf32>
    %196 = vector.extract_strided_slice %194 {offsets = [0, 8], sizes = [4, 8], strides = [1, 1]} : vector<4x128xf32> to vector<4x8xf32>
    %197 = vector.extract_strided_slice %194 {offsets = [0, 16], sizes = [4, 8], strides = [1, 1]} : vector<4x128xf32> to vector<4x8xf32>
    %198 = vector.extract_strided_slice %194 {offsets = [0, 24], sizes = [4, 8], strides = [1, 1]} : vector<4x128xf32> to vector<4x8xf32>
    %199 = arith.mulf %196, %187 : vector<4x8xf32>
    %200 = arith.mulf %195, %197 : vector<4x8xf32>
    %201 = arith.addf %199, %200 : vector<4x8xf32>
    %202 = math.tanh %201 : vector<4x8xf32>
    %203 = arith.mulf %198, %202 : vector<4x8xf32>
    %cst_47 = arith.constant dense<0.000000e+00> : vector<4x128xf32>
    %204 = tpu.matmul %203, %129, %cst_47 {dimension_numbers = #tpu.dot_dimension_numbers<[1], [0], [0], [1], [0, 0, 1, 1], [], []>} : vector<4x8xf32>, vector<8x128xf32>, vector<4x128xf32> -> vector<4x128xf32>
    %205 = arith.addf %143, %204 : vector<4x128xf32>
    %206 = math.tanh %205 : vector<4x128xf32>
    %207 = arith.mulf %206, %8 : vector<4x128xf32>
    %208 = arith.addf %207, %11 : vector<4x128xf32>
    %209 = vector.extract_strided_slice %208 {offsets = [0, 0], sizes = [4, 8], strides = [1, 1]} : vector<4x128xf32> to vector<4x8xf32>
    %210 = vector.extract_strided_slice %208 {offsets = [0, 8], sizes = [4, 8], strides = [1, 1]} : vector<4x128xf32> to vector<4x8xf32>
    %211 = vector.extract_strided_slice %208 {offsets = [0, 16], sizes = [4, 8], strides = [1, 1]} : vector<4x128xf32> to vector<4x8xf32>
    %212 = vector.extract_strided_slice %208 {offsets = [0, 24], sizes = [4, 8], strides = [1, 1]} : vector<4x128xf32> to vector<4x8xf32>
    %213 = arith.mulf %210, %201 : vector<4x8xf32>
    %214 = arith.mulf %209, %211 : vector<4x8xf32>
    %215 = arith.addf %213, %214 : vector<4x8xf32>
    %216 = math.tanh %215 : vector<4x8xf32>
    %217 = arith.mulf %212, %216 : vector<4x8xf32>
    %cst_48 = arith.constant dense<0.000000e+00> : vector<4x128xf32>
    %218 = tpu.matmul %217, %129, %cst_48 {dimension_numbers = #tpu.dot_dimension_numbers<[1], [0], [0], [1], [0, 0, 1, 1], [], []>} : vector<4x8xf32>, vector<8x128xf32>, vector<4x128xf32> -> vector<4x128xf32>
    %219 = arith.addf %145, %218 : vector<4x128xf32>
    %220 = math.tanh %219 : vector<4x128xf32>
    %221 = arith.mulf %220, %8 : vector<4x128xf32>
    %222 = arith.addf %221, %11 : vector<4x128xf32>
    %223 = vector.extract_strided_slice %222 {offsets = [0, 0], sizes = [4, 8], strides = [1, 1]} : vector<4x128xf32> to vector<4x8xf32>
    %224 = vector.extract_strided_slice %222 {offsets = [0, 8], sizes = [4, 8], strides = [1, 1]} : vector<4x128xf32> to vector<4x8xf32>
    %225 = vector.extract_strided_slice %222 {offsets = [0, 16], sizes = [4, 8], strides = [1, 1]} : vector<4x128xf32> to vector<4x8xf32>
    %226 = vector.extract_strided_slice %222 {offsets = [0, 24], sizes = [4, 8], strides = [1, 1]} : vector<4x128xf32> to vector<4x8xf32>
    %227 = arith.mulf %224, %215 : vector<4x8xf32>
    %228 = arith.mulf %223, %225 : vector<4x8xf32>
    %229 = arith.addf %227, %228 : vector<4x8xf32>
    %230 = math.tanh %229 : vector<4x8xf32>
    %231 = arith.mulf %226, %230 : vector<4x8xf32>
    %c0_49 = arith.constant 0 : index
    %c0_50 = arith.constant 0 : index
    %232 = vector.load %arg4[%c0_49, %c0_50] : memref<8x2xf32, #tpu.memory_space<vmem>>, vector<8x2xf32>
    %cst_51 = arith.constant dense<0.000000e+00> : vector<4x2xf32>
    %233 = tpu.matmul %231, %232, %cst_51 {dimension_numbers = #tpu.dot_dimension_numbers<[1], [0], [0], [1], [0, 0, 1, 1], [], []>} : vector<4x8xf32>, vector<8x2xf32>, vector<4x2xf32> -> vector<4x2xf32>
    %c0_52 = arith.constant 0 : index
    %c0_53 = arith.constant 0 : index
    %234 = vector.load %arg5[%c0_52, %c0_53] : memref<1x2xf32, #tpu.memory_space<vmem>>, vector<1x2xf32>
    %235 = vector.broadcast %234 : vector<1x2xf32> to vector<4x2xf32>
    %236 = arith.addf %233, %235 : vector<4x2xf32>
    %c0_54 = arith.constant 0 : index
    %c0_55 = arith.constant 0 : index
    %237 = vector.load %arg6[%c0_54, %c0_55] : memref<4x2xf32, #tpu.memory_space<vmem>>, vector<4x2xf32>
    tpu.vector_store %arg6[%c0_54, %c0_55], %236 {strides = array<i32>} : memref<4x2xf32, #tpu.memory_space<vmem>>, vector<4x2xf32>,
    return
  }
}

</mosaic_0001>

<llo_original>
// kernel: model_forward.1
$region0: #{model_forward.1}
  #allocation0 [shape = 'u32[]', space=smem, size = 0x4, offset = 0x4, fixed_abs, tag = 'smem constant byte address 0x4 - core index']
  #allocation1 [shape = 'u32[144,128]{1,0:T(1,128)}', space=vmem, size = 0x12000, scoped, tag = 'internal scratch']
  %s0 = inlined_call_operand.vmem [shape: f32[4,12], index: 0, kind: input, shape index: {}]
  %s1 = inlined_call_operand.vmem [shape: f32[2,8,128], index: 1, kind: input, shape index: {}]
  %s2 = inlined_call_operand.vmem [shape: f32[2,8,128], index: 2, kind: input, shape index: {}]
  %s3 = inlined_call_operand.vmem [shape: f32[2,1,128], index: 3, kind: input, shape index: {}]
  %s4 = inlined_call_operand.vmem [shape: f32[8,2], index: 4, kind: input, shape index: {}]
  %s5 = inlined_call_operand.vmem [shape: f32[1,2], index: 5, kind: input, shape index: {}]
  %s6 = inlined_call_operand.vmem [shape: f32[4,2], index: 6, kind: output, shape index: {}]
  %s7 = sld [smem:[#allocation0]]
  $region34: #{model_forward.1} parent=0
    _
  %s9 = ssub.s32 1, %s7
  %s10 = scalar_select 0, %s9, %s7
  // Predicated region
  $region2: #{model_forward.1} parent=0 // pred_check
    _
  $region3: #{model_forward.1} parent=0 // pred_check_branch
    %12 = sbr.rel (0) target = $region5
  $region4: #{model_forward.1} parent=0 // pred_region
    _
  $region5: #{model_forward.1} parent=0 // pred_fallthru
    _
  // Predicated region
  $region6: #{model_forward.1} parent=0 // pred_check
    _
  $region7: #{model_forward.1} parent=0 // pred_check_branch
    %14 = sbr.rel (0) target = $region9
  $region8: #{model_forward.1} parent=0 // pred_region
    _
  $region9: #{model_forward.1} parent=0 // pred_fallthru
    _
  // Predicated region
  $region10: #{model_forward.1} parent=0 // pred_check
    _
  $region11: #{model_forward.1} parent=0 // pred_check_branch
    %16 = sbr.rel (0) target = $region13
  $region12: #{model_forward.1} parent=0 // pred_region
    _
  $region13: #{model_forward.1} parent=0 // pred_fallthru
    _
  // Predicated region
  $region14: #{model_forward.1} parent=0 // pred_check
    _
  $region15: #{model_forward.1} parent=0 // pred_check_branch
    %18 = sbr.rel (0) target = $region17
  $region16: #{model_forward.1} parent=0 // pred_region
    _
  $region17: #{model_forward.1} parent=0 // pred_fallthru
    _
  // Predicated region
  $region18: #{model_forward.1} parent=0 // pred_check
    _
  $region19: #{model_forward.1} parent=0 // pred_check_branch
    %20 = sbr.rel (0) target = $region21
  $region20: #{model_forward.1} parent=0 // pred_region
    _
  $region21: #{model_forward.1} parent=0 // pred_fallthru
    _
  // Predicated region
  $region22: #{model_forward.1} parent=0 // pred_check
    _
  $region23: #{model_forward.1} parent=0 // pred_check_branch
    %22 = sbr.rel (0) target = $region25
  $region24: #{model_forward.1} parent=0 // pred_region
    _
  $region25: #{model_forward.1} parent=0 // pred_fallthru
    _
  %v23 = vlaneseq
  %v24 = vand.u32 %v23, 127
  %vm25 = vcmp.ge.s32.totalorder %v24, 16
  %vm26 = vcmp.lt.s32.totalorder %v24, 24
  %vm27 = vmand %vm25, %vm26
  %v28 = vsel %vm27, 1.0, 0.5
  %v29 = vsel %vm27, 0.0, 0.5
  %v30 = vld [vmem:[%s0] sm:$0xf]
  %v31 = vld [vmem:[%s1] sm:$0xff]
  %v32 = vld [vmem:[%s2] sm:$0xff]
  %v33 = vld [vmem:[%s3] sm:$0x1]
  %v35 = vlaneseq
  %v36 = vshrl.u32 %v35, 7
  %v37 = vsub.s32 0, %v36
  %v38 = vrot.slane %v33, %v37
  %vm40 = vcmask 15360
  %v42 = vsel %vm40, %v30, 0
  %vm44 = vcmask 1041408
  %v46 = vsel %vm44, %v31, 0
  %48 = vmatprep.subr.mxu0 0.0
  %49 = vmatpush1.msra.mxu0 %v46
  %50 = vmatprep.subr.mxu0 0.0
  %51 = vmatpush1.msra.mxu0 0.0
  %52 = vmatprep.subr.mxu0 0.0
  %53 = vmatpush1.msra.mxu0 0.0
  %54 = vmatprep.subr.mxu0 0.0
  %55 = vmatpush1.msra.mxu0 0.0
  %56 = vmatprep.subr.mxu0 0.0
  %57 = vmatpush1.msra.mxu0 0.0
  %58 = vmatprep.subr.mxu0 0.0
  %59 = vmatpush1.msra.mxu0 0.0
  %60 = vmatprep.subr.mxu0 0.0
  %61 = vmatpush1.msra.mxu0 0.0
  %62 = vmatprep.subr.mxu0 0.0
  %63 = vmatpush1.msra.mxu0 0.0
  %64 = vmatprep.subr.mxu0 0.0
  %65 = vmatpush1.msra.mxu0 0.0
  %66 = vmatprep.subr.mxu0 0.0
  %67 = vmatpush1.msra.mxu0 0.0
  %68 = vmatprep.subr.mxu0 0.0
  %69 = vmatpush1.msra.mxu0 0.0
  %70 = vmatprep.subr.mxu0 0.0
  %71 = vmatpush1.msra.mxu0 0.0
  %72 = vmatprep.subr.mxu0 0.0
  %73 = vmatpush1.msra.mxu0 0.0
  %74 = vmatprep.subr.mxu0 0.0
  %75 = vmatpush1.msra.mxu0 0.0
  %76 = vmatprep.subr.mxu0 0.0
  %77 = vmatpush1.msra.mxu0 0.0
  %78 = vmatprep.subr.mxu0 0.0
  %79 = vmatpush1.msra.mxu0 0.0
  %80 = vmatprep.subr.mxu0 0.0
  %81 = vmatpush1.msra.mxu0 0.0
  %82 = vmatprep.subr.mxu0 0.0
  %83 = vmatpush1.msra.mxu0 0.0
  %84 = vmatprep.subr.mxu0 0.0
  %85 = vmatpush1.msra.mxu0 0.0
  %86 = vmatprep.subr.mxu0 0.0
  %87 = vmatpush1.msra.mxu0 0.0
  %88 = vmatprep.subr.mxu0 0.0
  %89 = vmatpush1.msra.mxu0 0.0
  %90 = vmatprep.subr.mxu0 0.0
  %91 = vmatpush1.msra.mxu0 0.0
  %92 = vmatprep.subr.mxu0 0.0
  %93 = vmatpush1.msra.mxu0 0.0
  %94 = vmatprep.subr.mxu0 0.0
  %95 = vmatpush1.msra.mxu0 0.0
  %96 = vmatprep.subr.mxu0 0.0
  %97 = vmatpush1.msra.mxu0 0.0
  %98 = vmatprep.subr.mxu0 0.0
  %99 = vmatpush1.msra.mxu0 0.0
  %100 = vmatprep.subr.mxu0 0.0
  %101 = vmatpush1.msra.mxu0 0.0
  %102 = vmatprep.subr.mxu0 0.0
  %103 = vmatpush1.msra.mxu0 0.0
  %104 = vmatprep.subr.mxu0 0.0
  %105 = vmatpush1.msra.mxu0 0.0
  %106 = vmatprep.subr.mxu0 0.0
  %107 = vmatpush1.msra.mxu0 0.0
  %108 = vmatprep.subr.mxu0 0.0
  %109 = vmatpush1.msra.mxu0 0.0
  %110 = vmatprep.subr.mxu0 0.0
  %111 = vmatpush1.msra.mxu0 0.0
  %112 = vmatprep.mubr.f32.mxu0 0.0
  %113 = vmatmul.mubr.f32.gmra.mrb[0].mxu0 %v42
  %v114 = vpop.f32.mrb[0].mxu0
  %v115 = vadd.f32 %v38, %v114
  %v116 = vpop.f32.mrb[0].mxu0
  %117 = vdwg.mxu0
  %118 = vrot.lane.b32.xlu0 %v30, 126
  %v119 = vpop.permute.xlu0 %118
  %v120 = vsel %vm40, %v119, 0
  %122 = vmatprep.subr.mxu0 0.0
  %123 = vmatpush1.msra.mxu0 %v46
  %124 = vmatprep.subr.mxu0 0.0
  %125 = vmatpush1.msra.mxu0 0.0
  %126 = vmatprep.subr.mxu0 0.0
  %127 = vmatpush1.msra.mxu0 0.0
  %128 = vmatprep.subr.mxu0 0.0
  %129 = vmatpush1.msra.mxu0 0.0
  %130 = vmatprep.subr.mxu0 0.0
  %131 = vmatpush1.msra.mxu0 0.0
  %132 = vmatprep.subr.mxu0 0.0
  %133 = vmatpush1.msra.mxu0 0.0
  %134 = vmatprep.subr.mxu0 0.0
  %135 = vmatpush1.msra.mxu0 0.0
  %136 = vmatprep.subr.mxu0 0.0
  %137 = vmatpush1.msra.mxu0 0.0
  %138 = vmatprep.subr.mxu0 0.0
  %139 = vmatpush1.msra.mxu0 0.0
  %140 = vmatprep.subr.mxu0 0.0
  %141 = vmatpush1.msra.mxu0 0.0
  %142 = vmatprep.subr.mxu0 0.0
  %143 = vmatpush1.msra.mxu0 0.0
  %144 = vmatprep.subr.mxu0 0.0
  %145 = vmatpush1.msra.mxu0 0.0
  %146 = vmatprep.subr.mxu0 0.0
  %147 = vmatpush1.msra.mxu0 0.0
  %148 = vmatprep.subr.mxu0 0.0
  %149 = vmatpush1.msra.mxu0 0.0
  %150 = vmatprep.subr.mxu0 0.0
  %151 = vmatpush1.msra.mxu0 0.0
  %152 = vmatprep.subr.mxu0 0.0
  %153 = vmatpush1.msra.mxu0 0.0
  %154 = vmatprep.subr.mxu0 0.0
  %155 = vmatpush1.msra.mxu0 0.0
  %156 = vmatprep.subr.mxu0 0.0
  %157 = vmatpush1.msra.mxu0 0.0
  %158 = vmatprep.subr.mxu0 0.0
  %159 = vmatpush1.msra.mxu0 0.0
  %160 = vmatprep.subr.mxu0 0.0
  %161 = vmatpush1.msra.mxu0 0.0
  %162 = vmatprep.subr.mxu0 0.0
  %163 = vmatpush1.msra.mxu0 0.0
  %164 = vmatprep.subr.mxu0 0.0
  %165 = vmatpush1.msra.mxu0 0.0
  %166 = vmatprep.subr.mxu0 0.0
  %167 = vmatpush1.msra.mxu0 0.0
  %168 = vmatprep.subr.mxu0 0.0
  %169 = vmatpush1.msra.mxu0 0.0
  %170 = vmatprep.subr.mxu0 0.0
  %171 = vmatpush1.msra.mxu0 0.0
  %172 = vmatprep.subr.mxu0 0.0
  %173 = vmatpush1.msra.mxu0 0.0
  %174 = vmatprep.subr.mxu0 0.0
  %175 = vmatpush1.msra.mxu0 0.0
  %176 = vmatprep.subr.mxu0 0.0
  %177 = vmatpush1.msra.mxu0 0.0
  %178 = vmatprep.subr.mxu0 0.0
  %179 = vmatpush1.msra.mxu0 0.0
  %180 = vmatprep.subr.mxu0 0.0
  %181 = vmatpush1.msra.mxu0 0.0
  %182 = vmatprep.subr.mxu0 0.0
  %183 = vmatpush1.msra.mxu0 0.0
  %184 = vmatprep.subr.mxu0 0.0
  %185 = vmatpush1.msra.mxu0 0.0
  %186 = vmatprep.mubr.f32.mxu0 0.0
  %187 = vmatmul.mubr.f32.gmra.mrb[0].mxu0 %v120
  %v188 = vpop.f32.mrb[0].mxu0
  %v189 = vadd.f32 %v38, %v188
  %v190 = vpop.f32.mrb[0].mxu0
  %191 = vdwg.mxu0
  %192 = vrot.lane.b32.xlu0 %v30, 124
  %v193 = vpop.permute.xlu0 %192
  %v194 = vsel %vm40, %v193, 0
  %196 = vmatprep.subr.mxu0 0.0
  %197 = vmatpush1.msra.mxu0 %v46
  %198 = vmatprep.subr.mxu0 0.0
  %199 = vmatpush1.msra.mxu0 0.0
  %200 = vmatprep.subr.mxu0 0.0
  %201 = vmatpush1.msra.mxu0 0.0
  %202 = vmatprep.subr.mxu0 0.0
  %203 = vmatpush1.msra.mxu0 0.0
  %204 = vmatprep.subr.mxu0 0.0
  %205 = vmatpush1.msra.mxu0 0.0
  %206 = vmatprep.subr.mxu0 0.0
  %207 = vmatpush1.msra.mxu0 0.0
  %208 = vmatprep.subr.mxu0 0.0
  %209 = vmatpush1.msra.mxu0 0.0
  %210 = vmatprep.subr.mxu0 0.0
  %211 = vmatpush1.msra.mxu0 0.0
  %212 = vmatprep.subr.mxu0 0.0
  %213 = vmatpush1.msra.mxu0 0.0
  %214 = vmatprep.subr.mxu0 0.0
  %215 = vmatpush1.msra.mxu0 0.0
  %216 = vmatprep.subr.mxu0 0.0
  %217 = vmatpush1.msra.mxu0 0.0
  %218 = vmatprep.subr.mxu0 0.0
  %219 = vmatpush1.msra.mxu0 0.0
  %220 = vmatprep.subr.mxu0 0.0
  %221 = vmatpush1.msra.mxu0 0.0
  %222 = vmatprep.subr.mxu0 0.0
  %223 = vmatpush1.msra.mxu0 0.0
  %224 = vmatprep.subr.mxu0 0.0
  %225 = vmatpush1.msra.mxu0 0.0
  %226 = vmatprep.subr.mxu0 0.0
  %227 = vmatpush1.msra.mxu0 0.0
  %228 = vmatprep.subr.mxu0 0.0
  %229 = vmatpush1.msra.mxu0 0.0
  %230 = vmatprep.subr.mxu0 0.0
  %231 = vmatpush1.msra.mxu0 0.0
  %232 = vmatprep.subr.mxu0 0.0
  %233 = vmatpush1.msra.mxu0 0.0
  %234 = vmatprep.subr.mxu0 0.0
  %235 = vmatpush1.msra.mxu0 0.0
  %236 = vmatprep.subr.mxu0 0.0
  %237 = vmatpush1.msra.mxu0 0.0
  %238 = vmatprep.subr.mxu0 0.0
  %239 = vmatpush1.msra.mxu0 0.0
  %240 = vmatprep.subr.mxu0 0.0
  %241 = vmatpush1.msra.mxu0 0.0
  %242 = vmatprep.subr.mxu0 0.0
  %243 = vmatpush1.msra.mxu0 0.0
  %244 = vmatprep.subr.mxu0 0.0
  %245 = vmatpush1.msra.mxu0 0.0
  %246 = vmatprep.subr.mxu0 0.0
  %247 = vmatpush1.msra.mxu0 0.0
  %248 = vmatprep.subr.mxu0 0.0
  %249 = vmatpush1.msra.mxu0 0.0
  %250 = vmatprep.subr.mxu0 0.0
  %251 = vmatpush1.msra.mxu0 0.0
  %252 = vmatprep.subr.mxu0 0.0
  %253 = vmatpush1.msra.mxu0 0.0
  %254 = vmatprep.subr.mxu0 0.0
  %255 = vmatpush1.msra.mxu0 0.0
  %256 = vmatprep.subr.mxu0 0.0
  %257 = vmatpush1.msra.mxu0 0.0
  %258 = vmatprep.subr.mxu0 0.0
  %259 = vmatpush1.msra.mxu0 0.0
  %260 = vmatprep.mubr.f32.mxu0 0.0
  %261 = vmatmul.mubr.f32.gmra.mrb[0].mxu0 %v194
  %v262 = vpop.f32.mrb[0].mxu0
  %v263 = vadd.f32 %v38, %v262
  %v264 = vpop.f32.mrb[0].mxu0
  %265 = vdwg.mxu0
  %266 = vrot.lane.b32.xlu0 %v30, 122
  %v267 = vpop.permute.xlu0 %266
  %v268 = vsel %vm40, %v267, 0
  %270 = vmatprep.subr.mxu0 0.0
  %271 = vmatpush1.msra.mxu0 %v46
  %272 = vmatprep.subr.mxu0 0.0
  %273 = vmatpush1.msra.mxu0 0.0
  %274 = vmatprep.subr.mxu0 0.0
  %275 = vmatpush1.msra.mxu0 0.0
  %276 = vmatprep.subr.mxu0 0.0
  %277 = vmatpush1.msra.mxu0 0.0
  %278 = vmatprep.subr.mxu0 0.0
  %279 = vmatpush1.msra.mxu0 0.0
  %280 = vmatprep.subr.mxu0 0.0
  %281 = vmatpush1.msra.mxu0 0.0
  %282 = vmatprep.subr.mxu0 0.0
  %283 = vmatpush1.msra.mxu0 0.0
  %284 = vmatprep.subr.mxu0 0.0
  %285 = vmatpush1.msra.mxu0 0.0
  %286 = vmatprep.subr.mxu0 0.0
  %287 = vmatpush1.msra.mxu0 0.0
  %288 = vmatprep.subr.mxu0 0.0
  %289 = vmatpush1.msra.mxu0 0.0
  %290 = vmatprep.subr.mxu0 0.0
  %291 = vmatpush1.msra.mxu0 0.0
  %292 = vmatprep.subr.mxu0 0.0
  %293 = vmatpush1.msra.mxu0 0.0
  %294 = vmatprep.subr.mxu0 0.0
  %295 = vmatpush1.msra.mxu0 0.0
  %296 = vmatprep.subr.mxu0 0.0
  %297 = vmatpush1.msra.mxu0 0.0
  %298 = vmatprep.subr.mxu0 0.0
  %299 = vmatpush1.msra.mxu0 0.0
  %300 = vmatprep.subr.mxu0 0.0
  %301 = vmatpush1.msra.mxu0 0.0
  %302 = vmatprep.subr.mxu0 0.0
  %303 = vmatpush1.msra.mxu0 0.0
  %304 = vmatprep.subr.mxu0 0.0
  %305 = vmatpush1.msra.mxu0 0.0
  %306 = vmatprep.subr.mxu0 0.0
  %307 = vmatpush1.msra.mxu0 0.0
  %308 = vmatprep.subr.mxu0 0.0
  %309 = vmatpush1.msra.mxu0 0.0
  %310 = vmatprep.subr.mxu0 0.0
  %311 = vmatpush1.msra.mxu0 0.0
  %312 = vmatprep.subr.mxu0 0.0
  %313 = vmatpush1.msra.mxu0 0.0
  %314 = vmatprep.subr.mxu0 0.0
  %315 = vmatpush1.msra.mxu0 0.0
  %316 = vmatprep.subr.mxu0 0.0
  %317 = vmatpush1.msra.mxu0 0.0
  %318 = vmatprep.subr.mxu0 0.0
  %319 = vmatpush1.msra.mxu0 0.0
  %320 = vmatprep.subr.mxu0 0.0
  %321 = vmatpush1.msra.mxu0 0.0
  %322 = vmatprep.subr.mxu0 0.0
  %323 = vmatpush1.msra.mxu0 0.0
  %324 = vmatprep.subr.mxu0 0.0
  %325 = vmatpush1.msra.mxu0 0.0
  %326 = vmatprep.subr.mxu0 0.0
  %327 = vmatpush1.msra.mxu0 0.0
  %328 = vmatprep.subr.mxu0 0.0
  %329 = vmatpush1.msra.mxu0 0.0
  %330 = vmatprep.subr.mxu0 0.0
  %331 = vmatpush1.msra.mxu0 0.0
  %332 = vmatprep.subr.mxu0 0.0
  %333 = vmatpush1.msra.mxu0 0.0
  %334 = vmatprep.mubr.f32.mxu0 0.0
  %335 = vmatmul.mubr.f32.gmra.mrb[0].mxu0 %v268
  %v336 = vpop.f32.mrb[0].mxu0
  %v337 = vadd.f32 %v38, %v336
  %v338 = vpop.f32.mrb[0].mxu0
  %339 = vdwg.mxu0
  %340 = vrot.lane.b32.xlu0 %v30, 120
  %v341 = vpop.permute.xlu0 %340
  %v342 = vsel %vm40, %v341, 0
  %344 = vmatprep.subr.mxu0 0.0
  %345 = vmatpush1.msra.mxu0 %v46
  %346 = vmatprep.subr.mxu0 0.0
  %347 = vmatpush1.msra.mxu0 0.0
  %348 = vmatprep.subr.mxu0 0.0
  %349 = vmatpush1.msra.mxu0 0.0
  %350 = vmatprep.subr.mxu0 0.0
  %351 = vmatpush1.msra.mxu0 0.0
  %352 = vmatprep.subr.mxu0 0.0
  %353 = vmatpush1.msra.mxu0 0.0
  %354 = vmatprep.subr.mxu0 0.0
  %355 = vmatpush1.msra.mxu0 0.0
  %356 = vmatprep.subr.mxu0 0.0
  %357 = vmatpush1.msra.mxu0 0.0
  %358 = vmatprep.subr.mxu0 0.0
  %359 = vmatpush1.msra.mxu0 0.0
  %360 = vmatprep.subr.mxu0 0.0
  %361 = vmatpush1.msra.mxu0 0.0
  %362 = vmatprep.subr.mxu0 0.0
  %363 = vmatpush1.msra.mxu0 0.0
  %364 = vmatprep.subr.mxu0 0.0
  %365 = vmatpush1.msra.mxu0 0.0
  %366 = vmatprep.subr.mxu0 0.0
  %367 = vmatpush1.msra.mxu0 0.0
  %368 = vmatprep.subr.mxu0 0.0
  %369 = vmatpush1.msra.mxu0 0.0
  %370 = vmatprep.subr.mxu0 0.0
  %371 = vmatpush1.msra.mxu0 0.0
  %372 = vmatprep.subr.mxu0 0.0
  %373 = vmatpush1.msra.mxu0 0.0
  %374 = vmatprep.subr.mxu0 0.0
  %375 = vmatpush1.msra.mxu0 0.0
  %376 = vmatprep.subr.mxu0 0.0
  %377 = vmatpush1.msra.mxu0 0.0
  %378 = vmatprep.subr.mxu0 0.0
  %379 = vmatpush1.msra.mxu0 0.0
  %380 = vmatprep.subr.mxu0 0.0
  %381 = vmatpush1.msra.mxu0 0.0
  %382 = vmatprep.subr.mxu0 0.0
  %383 = vmatpush1.msra.mxu0 0.0
  %384 = vmatprep.subr.mxu0 0.0
  %385 = vmatpush1.msra.mxu0 0.0
  %386 = vmatprep.subr.mxu0 0.0
  %387 = vmatpush1.msra.mxu0 0.0
  %388 = vmatprep.subr.mxu0 0.0
  %389 = vmatpush1.msra.mxu0 0.0
  %390 = vmatprep.subr.mxu0 0.0
  %391 = vmatpush1.msra.mxu0 0.0
  %392 = vmatprep.subr.mxu0 0.0
  %393 = vmatpush1.msra.mxu0 0.0
  %394 = vmatprep.subr.mxu0 0.0
  %395 = vmatpush1.msra.mxu0 0.0
  %396 = vmatprep.subr.mxu0 0.0
  %397 = vmatpush1.msra.mxu0 0.0
  %398 = vmatprep.subr.mxu0 0.0
  %399 = vmatpush1.msra.mxu0 0.0
  %400 = vmatprep.subr.mxu0 0.0
  %401 = vmatpush1.msra.mxu0 0.0
  %402 = vmatprep.subr.mxu0 0.0
  %403 = vmatpush1.msra.mxu0 0.0
  %404 = vmatprep.subr.mxu0 0.0
  %405 = vmatpush1.msra.mxu0 0.0
  %406 = vmatprep.subr.mxu0 0.0
  %407 = vmatpush1.msra.mxu0 0.0
  %408 = vmatprep.mubr.f32.mxu0 0.0
  %409 = vmatmul.mubr.f32.gmra.mrb[0].mxu0 %v342
  %v410 = vpop.f32.mrb[0].mxu0
  %v411 = vadd.f32 %v38, %v410
  %v412 = vpop.f32.mrb[0].mxu0
  %413 = vdwg.mxu0
  %414 = vrot.lane.b32.xlu0 %v30, 118
  %v415 = vpop.permute.xlu0 %414
  %v416 = vsel %vm40, %v415, 0
  %418 = vmatprep.subr.mxu0 0.0
  %419 = vmatpush1.msra.mxu0 %v46
  %420 = vmatprep.subr.mxu0 0.0
  %421 = vmatpush1.msra.mxu0 0.0
  %422 = vmatprep.subr.mxu0 0.0
  %423 = vmatpush1.msra.mxu0 0.0
  %424 = vmatprep.subr.mxu0 0.0
  %425 = vmatpush1.msra.mxu0 0.0
  %426 = vmatprep.subr.mxu0 0.0
  %427 = vmatpush1.msra.mxu0 0.0
  %428 = vmatprep.subr.mxu0 0.0
  %429 = vmatpush1.msra.mxu0 0.0
  %430 = vmatprep.subr.mxu0 0.0
  %431 = vmatpush1.msra.mxu0 0.0
  %432 = vmatprep.subr.mxu0 0.0
  %433 = vmatpush1.msra.mxu0 0.0
  %434 = vmatprep.subr.mxu0 0.0
  %435 = vmatpush1.msra.mxu0 0.0
  %436 = vmatprep.subr.mxu0 0.0
  %437 = vmatpush1.msra.mxu0 0.0
  %438 = vmatprep.subr.mxu0 0.0
  %439 = vmatpush1.msra.mxu0 0.0
  %440 = vmatprep.subr.mxu0 0.0
  %441 = vmatpush1.msra.mxu0 0.0
  %442 = vmatprep.subr.mxu0 0.0
  %443 = vmatpush1.msra.mxu0 0.0
  %444 = vmatprep.subr.mxu0 0.0
  %445 = vmatpush1.msra.mxu0 0.0
  %446 = vmatprep.subr.mxu0 0.0
  %447 = vmatpush1.msra.mxu0 0.0
  %448 = vmatprep.subr.mxu0 0.0
  %449 = vmatpush1.msra.mxu0 0.0
  %450 = vmatprep.subr.mxu0 0.0
  %451 = vmatpush1.msra.mxu0 0.0
  %452 = vmatprep.subr.mxu0 0.0
  %453 = vmatpush1.msra.mxu0 0.0
  %454 = vmatprep.subr.mxu0 0.0
  %455 = vmatpush1.msra.mxu0 0.0
  %456 = vmatprep.subr.mxu0 0.0
  %457 = vmatpush1.msra.mxu0 0.0
  %458 = vmatprep.subr.mxu0 0.0
  %459 = vmatpush1.msra.mxu0 0.0
  %460 = vmatprep.subr.mxu0 0.0
  %461 = vmatpush1.msra.mxu0 0.0
  %462 = vmatprep.subr.mxu0 0.0
  %463 = vmatpush1.msra.mxu0 0.0
  %464 = vmatprep.subr.mxu0 0.0
  %465 = vmatpush1.msra.mxu0 0.0
  %466 = vmatprep.subr.mxu0 0.0
  %467 = vmatpush1.msra.mxu0 0.0
  %468 = vmatprep.subr.mxu0 0.0
  %469 = vmatpush1.msra.mxu0 0.0
  %470 = vmatprep.subr.mxu0 0.0
  %471 = vmatpush1.msra.mxu0 0.0
  %472 = vmatprep.subr.mxu0 0.0
  %473 = vmatpush1.msra.mxu0 0.0
  %474 = vmatprep.subr.mxu0 0.0
  %475 = vmatpush1.msra.mxu0 0.0
  %476 = vmatprep.subr.mxu0 0.0
  %477 = vmatpush1.msra.mxu0 0.0
  %478 = vmatprep.subr.mxu0 0.0
  %479 = vmatpush1.msra.mxu0 0.0
  %480 = vmatprep.subr.mxu0 0.0
  %481 = vmatpush1.msra.mxu0 0.0
  %482 = vmatprep.mubr.f32.mxu0 0.0
  %483 = vmatmul.mubr.f32.gmra.mrb[0].mxu0 %v416
  %v484 = vpop.f32.mrb[0].mxu0
  %v485 = vadd.f32 %v38, %v484
  %v486 = vpop.f32.mrb[0].mxu0
  %487 = vdwg.mxu0
  %vm488 = vcmask 64512
  %v490 = vsel %vm488, 0.0, 0
  %492 = vmatprep.subr.mxu0 0.0
  %493 = vmatpush1.msra.mxu0 %v32
  %494 = vmatprep.subr.mxu0 0.0
  %495 = vmatpush1.msra.mxu0 0.0
  %496 = vmatprep.subr.mxu0 0.0
  %497 = vmatpush1.msra.mxu0 0.0
  %498 = vmatprep.subr.mxu0 0.0
  %499 = vmatpush1.msra.mxu0 0.0
  %500 = vmatprep.subr.mxu0 0.0
  %501 = vmatpush1.msra.mxu0 0.0
  %502 = vmatprep.subr.mxu0 0.0
  %503 = vmatpush1.msra.mxu0 0.0
  %504 = vmatprep.subr.mxu0 0.0
  %505 = vmatpush1.msra.mxu0 0.0
  %506 = vmatprep.subr.mxu0 0.0
  %507 = vmatpush1.msra.mxu0 0.0
  %508 = vmatprep.subr.mxu0 0.0
  %509 = vmatpush1.msra.mxu0 0.0
  %510 = vmatprep.subr.mxu0 0.0
  %511 = vmatpush1.msra.mxu0 0.0
  %512 = vmatprep.subr.mxu0 0.0
  %513 = vmatpush1.msra.mxu0 0.0
  %514 = vmatprep.subr.mxu0 0.0
  %515 = vmatpush1.msra.mxu0 0.0
  %516 = vmatprep.subr.mxu0 0.0
  %517 = vmatpush1.msra.mxu0 0.0
  %518 = vmatprep.subr.mxu0 0.0
  %519 = vmatpush1.msra.mxu0 0.0
  %520 = vmatprep.subr.mxu0 0.0
  %521 = vmatpush1.msra.mxu0 0.0
  %522 = vmatprep.subr.mxu0 0.0
  %523 = vmatpush1.msra.mxu0 0.0
  %524 = vmatprep.subr.mxu0 0.0
  %525 = vmatpush1.msra.mxu0 0.0
  %526 = vmatprep.subr.mxu0 0.0
  %527 = vmatpush1.msra.mxu0 0.0
  %528 = vmatprep.subr.mxu0 0.0
  %529 = vmatpush1.msra.mxu0 0.0
  %530 = vmatprep.subr.mxu0 0.0
  %531 = vmatpush1.msra.mxu0 0.0
  %532 = vmatprep.subr.mxu0 0.0
  %533 = vmatpush1.msra.mxu0 0.0
  %534 = vmatprep.subr.mxu0 0.0
  %535 = vmatpush1.msra.mxu0 0.0
  %536 = vmatprep.subr.mxu0 0.0
  %537 = vmatpush1.msra.mxu0 0.0
  %538 = vmatprep.subr.mxu0 0.0
  %539 = vmatpush1.msra.mxu0 0.0
  %540 = vmatprep.subr.mxu0 0.0
  %541 = vmatpush1.msra.mxu0 0.0
  %542 = vmatprep.subr.mxu0 0.0
  %543 = vmatpush1.msra.mxu0 0.0
  %544 = vmatprep.subr.mxu0 0.0
  %545 = vmatpush1.msra.mxu0 0.0
  %546 = vmatprep.subr.mxu0 0.0
  %547 = vmatpush1.msra.mxu0 0.0
  %548 = vmatprep.subr.mxu0 0.0
  %549 = vmatpush1.msra.mxu0 0.0
  %550 = vmatprep.subr.mxu0 0.0
  %551 = vmatpush1.msra.mxu0 0.0
  %552 = vmatprep.subr.mxu0 0.0
  %553 = vmatpush1.msra.mxu0 0.0
  %554 = vmatprep.subr.mxu0 0.0
  %555 = vmatpush1.msra.mxu0 0.0
  %556 = vmatprep.mubr.f32.mxu0 0.0
  %557 = vmatmul.mubr.f32.gmra.mrb[0].mxu0 %v490
  %v558 = vpop.f32.mrb[0].mxu0
  %v559 = vadd.f32 0.0, %v558
  %v560 = vpop.f32.mrb[0].mxu0
  %561 = vdwg.mxu0
  %v562 = vadd.f32 %v115, %v559
  %v563 = vtanh.pop %v562
  %v564 = vmul.f32 %v563, %v28
  %v565 = vadd.f32 %v564, %v29
  %v566 = vmul.f32 %v565, 0.0
  %568 = vrot.lane.b32.xlu0 %v565, 112
  %v569 = vpop.permute.xlu0 %568
  %v571 = vmul.f32 %v565, %v569
  %573 = vrot.lane.b32.xlu0 %v571, 8
  %v574 = vpop.permute.xlu0 %573
  %v576 = vadd.f32 %v566, %v574
  %v577 = vtanh.pop %v576
  %579 = vrot.lane.b32.xlu0 %v577, 16
  %v580 = vpop.permute.xlu0 %579
  %v582 = vmul.f32 %v565, %v580
  %584 = vrot.lane.b32.xlu0 %v582, 104
  %v585 = vpop.permute.xlu0 %584
  %v586 = vsel %vm488, %v585, 0
  %588 = vmatprep.subr.mxu0 0.0
  %589 = vmatpush1.msra.mxu0 %v32
  %590 = vmatprep.subr.mxu0 0.0
  %591 = vmatpush1.msra.mxu0 0.0
  %592 = vmatprep.subr.mxu0 0.0
  %593 = vmatpush1.msra.mxu0 0.0
  %594 = vmatprep.subr.mxu0 0.0
  %595 = vmatpush1.msra.mxu0 0.0
  %596 = vmatprep.subr.mxu0 0.0
  %597 = vmatpush1.msra.mxu0 0.0
  %598 = vmatprep.subr.mxu0 0.0
  %599 = vmatpush1.msra.mxu0 0.0
  %600 = vmatprep.subr.mxu0 0.0
  %601 = vmatpush1.msra.mxu0 0.0
  %602 = vmatprep.subr.mxu0 0.0
  %603 = vmatpush1.msra.mxu0 0.0
  %604 = vmatprep.subr.mxu0 0.0
  %605 = vmatpush1.msra.mxu0 0.0
  %606 = vmatprep.subr.mxu0 0.0
  %607 = vmatpush1.msra.mxu0 0.0
  %608 = vmatprep.subr.mxu0 0.0
  %609 = vmatpush1.msra.mxu0 0.0
  %610 = vmatprep.subr.mxu0 0.0
  %611 = vmatpush1.msra.mxu0 0.0
  %612 = vmatprep.subr.mxu0 0.0
  %613 = vmatpush1.msra.mxu0 0.0
  %614 = vmatprep.subr.mxu0 0.0
  %615 = vmatpush1.msra.mxu0 0.0
  %616 = vmatprep.subr.mxu0 0.0
  %617 = vmatpush1.msra.mxu0 0.0
  %618 = vmatprep.subr.mxu0 0.0
  %619 = vmatpush1.msra.mxu0 0.0
  %620 = vmatprep.subr.mxu0 0.0
  %621 = vmatpush1.msra.mxu0 0.0
  %622 = vmatprep.subr.mxu0 0.0
  %623 = vmatpush1.msra.mxu0 0.0
  %624 = vmatprep.subr.mxu0 0.0
  %625 = vmatpush1.msra.mxu0 0.0
  %626 = vmatprep.subr.mxu0 0.0
  %627 = vmatpush1.msra.mxu0 0.0
  %628 = vmatprep.subr.mxu0 0.0
  %629 = vmatpush1.msra.mxu0 0.0
  %630 = vmatprep.subr.mxu0 0.0
  %631 = vmatpush1.msra.mxu0 0.0
  %632 = vmatprep.subr.mxu0 0.0
  %633 = vmatpush1.msra.mxu0 0.0
  %634 = vmatprep.subr.mxu0 0.0
  %635 = vmatpush1.msra.mxu0 0.0
  %636 = vmatprep.subr.mxu0 0.0
  %637 = vmatpush1.msra.mxu0 0.0
  %638 = vmatprep.subr.mxu0 0.0
  %639 = vmatpush1.msra.mxu0 0.0
  %640 = vmatprep.subr.mxu0 0.0
  %641 = vmatpush1.msra.mxu0 0.0
  %642 = vmatprep.subr.mxu0 0.0
  %643 = vmatpush1.msra.mxu0 0.0
  %644 = vmatprep.subr.mxu0 0.0
  %645 = vmatpush1.msra.mxu0 0.0
  %646 = vmatprep.subr.mxu0 0.0
  %647 = vmatpush1.msra.mxu0 0.0
  %648 = vmatprep.subr.mxu0 0.0
  %649 = vmatpush1.msra.mxu0 0.0
  %650 = vmatprep.subr.mxu0 0.0
  %651 = vmatpush1.msra.mxu0 0.0
  %652 = vmatprep.mubr.f32.mxu0 0.0
  %653 = vmatmul.mubr.f32.gmra.mrb[0].mxu0 %v586
  %v654 = vpop.f32.mrb[0].mxu0
  %v655 = vadd.f32 0.0, %v654
  %v656 = vpop.f32.mrb[0].mxu0
  %657 = vdwg.mxu0
  %v658 = vadd.f32 %v189, %v655
  %v659 = vtanh.pop %v658
  %v660 = vmul.f32 %v659, %v28
  %v661 = vadd.f32 %v660, %v29
  %v662 = vmul.f32 %v661, %v576
  %664 = vrot.lane.b32.xlu0 %v661, 112
  %v665 = vpop.permute.xlu0 %664
  %v667 = vmul.f32 %v661, %v665
  %669 = vrot.lane.b32.xlu0 %v667, 8
  %v670 = vpop.permute.xlu0 %669
  %v672 = vadd.f32 %v662, %v670
  %v673 = vtanh.pop %v672
  %675 = vrot.lane.b32.xlu0 %v673, 16
  %v676 = vpop.permute.xlu0 %675
  %v678 = vmul.f32 %v661, %v676
  %680 = vrot.lane.b32.xlu0 %v678, 104
  %v681 = vpop.permute.xlu0 %680
  %v682 = vsel %vm488, %v681, 0
  %684 = vmatprep.subr.mxu0 0.0
  %685 = vmatpush1.msra.mxu0 %v32
  %686 = vmatprep.subr.mxu0 0.0
  %687 = vmatpush1.msra.mxu0 0.0
  %688 = vmatprep.subr.mxu0 0.0
  %689 = vmatpush1.msra.mxu0 0.0
  %690 = vmatprep.subr.mxu0 0.0
  %691 = vmatpush1.msra.mxu0 0.0
  %692 = vmatprep.subr.mxu0 0.0
  %693 = vmatpush1.msra.mxu0 0.0
  %694 = vmatprep.subr.mxu0 0.0
  %695 = vmatpush1.msra.mxu0 0.0
  %696 = vmatprep.subr.mxu0 0.0
  %697 = vmatpush1.msra.mxu0 0.0
  %698 = vmatprep.subr.mxu0 0.0
  %699 = vmatpush1.msra.mxu0 0.0
  %700 = vmatprep.subr.mxu0 0.0
  %701 = vmatpush1.msra.mxu0 0.0
  %702 = vmatprep.subr.mxu0 0.0
  %703 = vmatpush1.msra.mxu0 0.0
  %704 = vmatprep.subr.mxu0 0.0
  %705 = vmatpush1.msra.mxu0 0.0
  %706 = vmatprep.subr.mxu0 0.0
  %707 = vmatpush1.msra.mxu0 0.0
  %708 = vmatprep.subr.mxu0 0.0
  %709 = vmatpush1.msra.mxu0 0.0
  %710 = vmatprep.subr.mxu0 0.0
  %711 = vmatpush1.msra.mxu0 0.0
  %712 = vmatprep.subr.mxu0 0.0
  %713 = vmatpush1.msra.mxu0 0.0
  %714 = vmatprep.subr.mxu0 0.0
  %715 = vmatpush1.msra.mxu0 0.0
  %716 = vmatprep.subr.mxu0 0.0
  %717 = vmatpush1.msra.mxu0 0.0
  %718 = vmatprep.subr.mxu0 0.0
  %719 = vmatpush1.msra.mxu0 0.0
  %720 = vmatprep.subr.mxu0 0.0
  %721 = vmatpush1.msra.mxu0 0.0
  %722 = vmatprep.subr.mxu0 0.0
  %723 = vmatpush1.msra.mxu0 0.0
  %724 = vmatprep.subr.mxu0 0.0
  %725 = vmatpush1.msra.mxu0 0.0
  %726 = vmatprep.subr.mxu0 0.0
  %727 = vmatpush1.msra.mxu0 0.0
  %728 = vmatprep.subr.mxu0 0.0
  %729 = vmatpush1.msra.mxu0 0.0
  %730 = vmatprep.subr.mxu0 0.0
  %731 = vmatpush1.msra.mxu0 0.0
  %732 = vmatprep.subr.mxu0 0.0
  %733 = vmatpush1.msra.mxu0 0.0
  %734 = vmatprep.subr.mxu0 0.0
  %735 = vmatpush1.msra.mxu0 0.0
  %736 = vmatprep.subr.mxu0 0.0
  %737 = vmatpush1.msra.mxu0 0.0
  %738 = vmatprep.subr.mxu0 0.0
  %739 = vmatpush1.msra.mxu0 0.0
  %740 = vmatprep.subr.mxu0 0.0
  %741 = vmatpush1.msra.mxu0 0.0
  %742 = vmatprep.subr.mxu0 0.0
  %743 = vmatpush1.msra.mxu0 0.0
  %744 = vmatprep.subr.mxu0 0.0
  %745 = vmatpush1.msra.mxu0 0.0
  %746 = vmatprep.subr.mxu0 0.0
  %747 = vmatpush1.msra.mxu0 0.0
  %748 = vmatprep.mubr.f32.mxu0 0.0
  %749 = vmatmul.mubr.f32.gmra.mrb[0].mxu0 %v682
  %v750 = vpop.f32.mrb[0].mxu0
  %v751 = vadd.f32 0.0, %v750
  %v752 = vpop.f32.mrb[0].mxu0
  %753 = vdwg.mxu0
  %v754 = vadd.f32 %v263, %v751
  %v755 = vtanh.pop %v754
  %v756 = vmul.f32 %v755, %v28
  %v757 = vadd.f32 %v756, %v29
  %v758 = vmul.f32 %v757, %v672
  %760 = vrot.lane.b32.xlu0 %v757, 112
  %v761 = vpop.permute.xlu0 %760
  %v763 = vmul.f32 %v757, %v761
  %765 = vrot.lane.b32.xlu0 %v763, 8
  %v766 = vpop.permute.xlu0 %765
  %v768 = vadd.f32 %v758, %v766
  %v769 = vtanh.pop %v768
  %771 = vrot.lane.b32.xlu0 %v769, 16
  %v772 = vpop.permute.xlu0 %771
  %v774 = vmul.f32 %v757, %v772
  %776 = vrot.lane.b32.xlu0 %v774, 104
  %v777 = vpop.permute.xlu0 %776
  %v778 = vsel %vm488, %v777, 0
  %780 = vmatprep.subr.mxu0 0.0
  %781 = vmatpush1.msra.mxu0 %v32
  %782 = vmatprep.subr.mxu0 0.0
  %783 = vmatpush1.msra.mxu0 0.0
  %784 = vmatprep.subr.mxu0 0.0
  %785 = vmatpush1.msra.mxu0 0.0
  %786 = vmatprep.subr.mxu0 0.0
  %787 = vmatpush1.msra.mxu0 0.0
  %788 = vmatprep.subr.mxu0 0.0
  %789 = vmatpush1.msra.mxu0 0.0
  %790 = vmatprep.subr.mxu0 0.0
  %791 = vmatpush1.msra.mxu0 0.0
  %792 = vmatprep.subr.mxu0 0.0
  %793 = vmatpush1.msra.mxu0 0.0
  %794 = vmatprep.subr.mxu0 0.0
  %795 = vmatpush1.msra.mxu0 0.0
  %796 = vmatprep.subr.mxu0 0.0
  %797 = vmatpush1.msra.mxu0 0.0
  %798 = vmatprep.subr.mxu0 0.0
  %799 = vmatpush1.msra.mxu0 0.0
  %800 = vmatprep.subr.mxu0 0.0
  %801 = vmatpush1.msra.mxu0 0.0
  %802 = vmatprep.subr.mxu0 0.0
  %803 = vmatpush1.msra.mxu0 0.0
  %804 = vmatprep.subr.mxu0 0.0
  %805 = vmatpush1.msra.mxu0 0.0
  %806 = vmatprep.subr.mxu0 0.0
  %807 = vmatpush1.msra.mxu0 0.0
  %808 = vmatprep.subr.mxu0 0.0
  %809 = vmatpush1.msra.mxu0 0.0
  %810 = vmatprep.subr.mxu0 0.0
  %811 = vmatpush1.msra.mxu0 0.0
  %812 = vmatprep.subr.mxu0 0.0
  %813 = vmatpush1.msra.mxu0 0.0
  %814 = vmatprep.subr.mxu0 0.0
  %815 = vmatpush1.msra.mxu0 0.0
  %816 = vmatprep.subr.mxu0 0.0
  %817 = vmatpush1.msra.mxu0 0.0
  %818 = vmatprep.subr.mxu0 0.0
  %819 = vmatpush1.msra.mxu0 0.0
  %820 = vmatprep.subr.mxu0 0.0
  %821 = vmatpush1.msra.mxu0 0.0
  %822 = vmatprep.subr.mxu0 0.0
  %823 = vmatpush1.msra.mxu0 0.0
  %824 = vmatprep.subr.mxu0 0.0
  %825 = vmatpush1.msra.mxu0 0.0
  %826 = vmatprep.subr.mxu0 0.0
  %827 = vmatpush1.msra.mxu0 0.0
  %828 = vmatprep.subr.mxu0 0.0
  %829 = vmatpush1.msra.mxu0 0.0
  %830 = vmatprep.subr.mxu0 0.0
  %831 = vmatpush1.msra.mxu0 0.0
  %832 = vmatprep.subr.mxu0 0.0
  %833 = vmatpush1.msra.mxu0 0.0
  %834 = vmatprep.subr.mxu0 0.0
  %835 = vmatpush1.msra.mxu0 0.0
  %836 = vmatprep.subr.mxu0 0.0
  %837 = vmatpush1.msra.mxu0 0.0
  %838 = vmatprep.subr.mxu0 0.0
  %839 = vmatpush1.msra.mxu0 0.0
  %840 = vmatprep.subr.mxu0 0.0
  %841 = vmatpush1.msra.mxu0 0.0
  %842 = vmatprep.subr.mxu0 0.0
  %843 = vmatpush1.msra.mxu0 0.0
  %844 = vmatprep.mubr.f32.mxu0 0.0
  %845 = vmatmul.mubr.f32.gmra.mrb[0].mxu0 %v778
  %v846 = vpop.f32.mrb[0].mxu0
  %v847 = vadd.f32 0.0, %v846
  %v848 = vpop.f32.mrb[0].mxu0
  %849 = vdwg.mxu0
  %v850 = vadd.f32 %v337, %v847
  %v851 = vtanh.pop %v850
  %v852 = vmul.f32 %v851, %v28
  %v853 = vadd.f32 %v852, %v29
  %v854 = vmul.f32 %v853, %v768
  %856 = vrot.lane.b32.xlu0 %v853, 112
  %v857 = vpop.permute.xlu0 %856
  %v859 = vmul.f32 %v853, %v857
  %861 = vrot.lane.b32.xlu0 %v859, 8
  %v862 = vpop.permute.xlu0 %861
  %v864 = vadd.f32 %v854, %v862
  %v865 = vtanh.pop %v864
  %867 = vrot.lane.b32.xlu0 %v865, 16
  %v868 = vpop.permute.xlu0 %867
  %v870 = vmul.f32 %v853, %v868
  %872 = vrot.lane.b32.xlu0 %v870, 104
  %v873 = vpop.permute.xlu0 %872
  %v874 = vsel %vm488, %v873, 0
  %876 = vmatprep.subr.mxu0 0.0
  %877 = vmatpush1.msra.mxu0 %v32
  %878 = vmatprep.subr.mxu0 0.0
  %879 = vmatpush1.msra.mxu0 0.0
  %880 = vmatprep.subr.mxu0 0.0
  %881 = vmatpush1.msra.mxu0 0.0
  %882 = vmatprep.subr.mxu0 0.0
  %883 = vmatpush1.msra.mxu0 0.0
  %884 = vmatprep.subr.mxu0 0.0
  %885 = vmatpush1.msra.mxu0 0.0
  %886 = vmatprep.subr.mxu0 0.0
  %887 = vmatpush1.msra.mxu0 0.0
  %888 = vmatprep.subr.mxu0 0.0
  %889 = vmatpush1.msra.mxu0 0.0
  %890 = vmatprep.subr.mxu0 0.0
  %891 = vmatpush1.msra.mxu0 0.0
  %892 = vmatprep.subr.mxu0 0.0
  %893 = vmatpush1.msra.mxu0 0.0
  %894 = vmatprep.subr.mxu0 0.0
  %895 = vmatpush1.msra.mxu0 0.0
  %896 = vmatprep.subr.mxu0 0.0
  %897 = vmatpush1.msra.mxu0 0.0
  %898 = vmatprep.subr.mxu0 0.0
  %899 = vmatpush1.msra.mxu0 0.0
  %900 = vmatprep.subr.mxu0 0.0
  %901 = vmatpush1.msra.mxu0 0.0
  %902 = vmatprep.subr.mxu0 0.0
  %903 = vmatpush1.msra.mxu0 0.0
  %904 = vmatprep.subr.mxu0 0.0
  %905 = vmatpush1.msra.mxu0 0.0
  %906 = vmatprep.subr.mxu0 0.0
  %907 = vmatpush1.msra.mxu0 0.0
  %908 = vmatprep.subr.mxu0 0.0
  %909 = vmatpush1.msra.mxu0 0.0
  %910 = vmatprep.subr.mxu0 0.0
  %911 = vmatpush1.msra.mxu0 0.0
  %912 = vmatprep.subr.mxu0 0.0
  %913 = vmatpush1.msra.mxu0 0.0
  %914 = vmatprep.subr.mxu0 0.0
  %915 = vmatpush1.msra.mxu0 0.0
  %916 = vmatprep.subr.mxu0 0.0
  %917 = vmatpush1.msra.mxu0 0.0
  %918 = vmatprep.subr.mxu0 0.0
  %919 = vmatpush1.msra.mxu0 0.0
  %920 = vmatprep.subr.mxu0 0.0
  %921 = vmatpush1.msra.mxu0 0.0
  %922 = vmatprep.subr.mxu0 0.0
  %923 = vmatpush1.msra.mxu0 0.0
  %924 = vmatprep.subr.mxu0 0.0
  %925 = vmatpush1.msra.mxu0 0.0
  %926 = vmatprep.subr.mxu0 0.0
  %927 = vmatpush1.msra.mxu0 0.0
  %928 = vmatprep.subr.mxu0 0.0
  %929 = vmatpush1.msra.mxu0 0.0
  %930 = vmatprep.subr.mxu0 0.0
  %931 = vmatpush1.msra.mxu0 0.0
  %932 = vmatprep.subr.mxu0 0.0
  %933 = vmatpush1.msra.mxu0 0.0
  %934 = vmatprep.subr.mxu0 0.0
  %935 = vmatpush1.msra.mxu0 0.0
  %936 = vmatprep.subr.mxu0 0.0
  %937 = vmatpush1.msra.mxu0 0.0
  %938 = vmatprep.subr.mxu0 0.0
  %939 = vmatpush1.msra.mxu0 0.0
  %940 = vmatprep.mubr.f32.mxu0 0.0
  %941 = vmatmul.mubr.f32.gmra.mrb[0].mxu0 %v874
  %v942 = vpop.f32.mrb[0].mxu0
  %v943 = vadd.f32 0.0, %v942
  %v944 = vpop.f32.mrb[0].mxu0
  %945 = vdwg.mxu0
  %v946 = vadd.f32 %v411, %v943
  %v947 = vtanh.pop %v946
  %v948 = vmul.f32 %v947, %v28
  %v949 = vadd.f32 %v948, %v29
  %v950 = vmul.f32 %v949, %v864
  %952 = vrot.lane.b32.xlu0 %v949, 112
  %v953 = vpop.permute.xlu0 %952
  %v955 = vmul.f32 %v949, %v953
  %957 = vrot.lane.b32.xlu0 %v955, 8
  %v958 = vpop.permute.xlu0 %957
  %v960 = vadd.f32 %v950, %v958
  %v961 = vtanh.pop %v960
  %963 = vrot.lane.b32.xlu0 %v961, 16
  %v964 = vpop.permute.xlu0 %963
  %v966 = vmul.f32 %v949, %v964
  %968 = vrot.lane.b32.xlu0 %v966, 104
  %v969 = vpop.permute.xlu0 %968
  %v970 = vsel %vm488, %v969, 0
  %972 = vmatprep.subr.mxu0 0.0
  %973 = vmatpush1.msra.mxu0 %v32
  %974 = vmatprep.subr.mxu0 0.0
  %975 = vmatpush1.msra.mxu0 0.0
  %976 = vmatprep.subr.mxu0 0.0
  %977 = vmatpush1.msra.mxu0 0.0
  %978 = vmatprep.subr.mxu0 0.0
  %979 = vmatpush1.msra.mxu0 0.0
  %980 = vmatprep.subr.mxu0 0.0
  %981 = vmatpush1.msra.mxu0 0.0
  %982 = vmatprep.subr.mxu0 0.0
  %983 = vmatpush1.msra.mxu0 0.0
  %984 = vmatprep.subr.mxu0 0.0
  %985 = vmatpush1.msra.mxu0 0.0
  %986 = vmatprep.subr.mxu0 0.0
  %987 = vmatpush1.msra.mxu0 0.0
  %988 = vmatprep.subr.mxu0 0.0
  %989 = vmatpush1.msra.mxu0 0.0
  %990 = vmatprep.subr.mxu0 0.0
  %991 = vmatpush1.msra.mxu0 0.0
  %992 = vmatprep.subr.mxu0 0.0
  %993 = vmatpush1.msra.mxu0 0.0
  %994 = vmatprep.subr.mxu0 0.0
  %995 = vmatpush1.msra.mxu0 0.0
  %996 = vmatprep.subr.mxu0 0.0
  %997 = vmatpush1.msra.mxu0 0.0
  %998 = vmatprep.subr.mxu0 0.0
  %999 = vmatpush1.msra.mxu0 0.0
  %1000 = vmatprep.subr.mxu0 0.0
  %1001 = vmatpush1.msra.mxu0 0.0
  %1002 = vmatprep.subr.mxu0 0.0
  %1003 = vmatpush1.msra.mxu0 0.0
  %1004 = vmatprep.subr.mxu0 0.0
  %1005 = vmatpush1.msra.mxu0 0.0
  %1006 = vmatprep.subr.mxu0 0.0
  %1007 = vmatpush1.msra.mxu0 0.0
  %1008 = vmatprep.subr.mxu0 0.0
  %1009 = vmatpush1.msra.mxu0 0.0
  %1010 = vmatprep.subr.mxu0 0.0
  %1011 = vmatpush1.msra.mxu0 0.0
  %1012 = vmatprep.subr.mxu0 0.0
  %1013 = vmatpush1.msra.mxu0 0.0
  %1014 = vmatprep.subr.mxu0 0.0
  %1015 = vmatpush1.msra.mxu0 0.0
  %1016 = vmatprep.subr.mxu0 0.0
  %1017 = vmatpush1.msra.mxu0 0.0
  %1018 = vmatprep.subr.mxu0 0.0
  %1019 = vmatpush1.msra.mxu0 0.0
  %1020 = vmatprep.subr.mxu0 0.0
  %1021 = vmatpush1.msra.mxu0 0.0
  %1022 = vmatprep.subr.mxu0 0.0
  %1023 = vmatpush1.msra.mxu0 0.0
  %1024 = vmatprep.subr.mxu0 0.0
  %1025 = vmatpush1.msra.mxu0 0.0
  %1026 = vmatprep.subr.mxu0 0.0
  %1027 = vmatpush1.msra.mxu0 0.0
  %1028 = vmatprep.subr.mxu0 0.0
  %1029 = vmatpush1.msra.mxu0 0.0
  %1030 = vmatprep.subr.mxu0 0.0
  %1031 = vmatpush1.msra.mxu0 0.0
  %1032 = vmatprep.subr.mxu0 0.0
  %1033 = vmatpush1.msra.mxu0 0.0
  %1034 = vmatprep.subr.mxu0 0.0
  %1035 = vmatpush1.msra.mxu0 0.0
  %1036 = vmatprep.mubr.f32.mxu0 0.0
  %1037 = vmatmul.mubr.f32.gmra.mrb[0].mxu0 %v970
  %v1038 = vpop.f32.mrb[0].mxu0
  %v1039 = vadd.f32 0.0, %v1038
  %v1040 = vpop.f32.mrb[0].mxu0
  %1041 = vdwg.mxu0
  %v1042 = vadd.f32 %v485, %v1039
  %v1043 = vtanh.pop %v1042
  %v1044 = vmul.f32 %v1043, %v28
  %v1045 = vadd.f32 %v1044, %v29
  %v1046 = vmul.f32 %v1045, %v960
  %1048 = vrot.lane.b32.xlu0 %v1045, 112
  %v1049 = vpop.permute.xlu0 %1048
  %v1051 = vmul.f32 %v1045, %v1049
  %1053 = vrot.lane.b32.xlu0 %v1051, 8
  %v1054 = vpop.permute.xlu0 %1053
  %v1056 = vadd.f32 %v1046, %v1054
  %v1057 = vtanh.pop %v1056
  %1059 = vrot.lane.b32.xlu0 %v1057, 16
  %v1060 = vpop.permute.xlu0 %1059
  %v1062 = vmul.f32 %v1045, %v1060
  %s1063 = scalar_lea.vmem %s1, 8
  %v1064 = vld [vmem:[%s1063] sm:$0xff]
  %s1065 = scalar_lea.vmem %s2, 8
  %v1066 = vld [vmem:[%s1065] sm:$0xff]
  %s1067 = scalar_lea.vmem %s3, 1
  %v1068 = vld [vmem:[%s1067] sm:$0x1]
  %v1070 = vlaneseq
  %v1071 = vshrl.u32 %v1070, 7
  %v1072 = vsub.s32 0, %v1071
  %v1073 = vrot.slane %v1068, %v1072
  %1075 = vmatprep.subr.mxu0 0.0
  %1076 = vmatpush1.msra.mxu0 %v1064
  %1077 = vmatprep.subr.mxu0 0.0
  %1078 = vmatpush1.msra.mxu0 0.0
  %1079 = vmatprep.subr.mxu0 0.0
  %1080 = vmatpush1.msra.mxu0 0.0
  %1081 = vmatprep.subr.mxu0 0.0
  %1082 = vmatpush1.msra.mxu0 0.0
  %1083 = vmatprep.subr.mxu0 0.0
  %1084 = vmatpush1.msra.mxu0 0.0
  %1085 = vmatprep.subr.mxu0 0.0
  %1086 = vmatpush1.msra.mxu0 0.0
  %1087 = vmatprep.subr.mxu0 0.0
  %1088 = vmatpush1.msra.mxu0 0.0
  %1089 = vmatprep.subr.mxu0 0.0
  %1090 = vmatpush1.msra.mxu0 0.0
  %1091 = vmatprep.subr.mxu0 0.0
  %1092 = vmatpush1.msra.mxu0 0.0
  %1093 = vmatprep.subr.mxu0 0.0
  %1094 = vmatpush1.msra.mxu0 0.0
  %1095 = vmatprep.subr.mxu0 0.0
  %1096 = vmatpush1.msra.mxu0 0.0
  %1097 = vmatprep.subr.mxu0 0.0
  %1098 = vmatpush1.msra.mxu0 0.0
  %1099 = vmatprep.subr.mxu0 0.0
  %1100 = vmatpush1.msra.mxu0 0.0
  %1101 = vmatprep.subr.mxu0 0.0
  %1102 = vmatpush1.msra.mxu0 0.0
  %1103 = vmatprep.subr.mxu0 0.0
  %1104 = vmatpush1.msra.mxu0 0.0
  %1105 = vmatprep.subr.mxu0 0.0
  %1106 = vmatpush1.msra.mxu0 0.0
  %1107 = vmatprep.subr.mxu0 0.0
  %1108 = vmatpush1.msra.mxu0 0.0
  %1109 = vmatprep.subr.mxu0 0.0
  %1110 = vmatpush1.msra.mxu0 0.0
  %1111 = vmatprep.subr.mxu0 0.0
  %1112 = vmatpush1.msra.mxu0 0.0
  %1113 = vmatprep.subr.mxu0 0.0
  %1114 = vmatpush1.msra.mxu0 0.0
  %1115 = vmatprep.subr.mxu0 0.0
  %1116 = vmatpush1.msra.mxu0 0.0
  %1117 = vmatprep.subr.mxu0 0.0
  %1118 = vmatpush1.msra.mxu0 0.0
  %1119 = vmatprep.subr.mxu0 0.0
  %1120 = vmatpush1.msra.mxu0 0.0
  %1121 = vmatprep.subr.mxu0 0.0
  %1122 = vmatpush1.msra.mxu0 0.0
  %1123 = vmatprep.subr.mxu0 0.0
  %1124 = vmatpush1.msra.mxu0 0.0
  %1125 = vmatprep.subr.mxu0 0.0
  %1126 = vmatpush1.msra.mxu0 0.0
  %1127 = vmatprep.subr.mxu0 0.0
  %1128 = vmatpush1.msra.mxu0 0.0
  %1129 = vmatprep.subr.mxu0 0.0
  %1130 = vmatpush1.msra.mxu0 0.0
  %1131 = vmatprep.subr.mxu0 0.0
  %1132 = vmatpush1.msra.mxu0 0.0
  %1133 = vmatprep.subr.mxu0 0.0
  %1134 = vmatpush1.msra.mxu0 0.0
  %1135 = vmatprep.subr.mxu0 0.0
  %1136 = vmatpush1.msra.mxu0 0.0
  %1137 = vmatprep.subr.mxu0 0.0
  %1138 = vmatpush1.msra.mxu0 0.0
  %1139 = vmatprep.mubr.f32.mxu0 0.0
  %1140 = vmatmul.mubr.f32.gmra.mrb[0].mxu0 %v586
  %v1141 = vpop.f32.mrb[0].mxu0
  %v1142 = vadd.f32 %v1073, %v1141
  %v1143 = vpop.f32.mrb[0].mxu0
  %1144 = vdwg.mxu0
  %1145 = vmatprep.subr.mxu0 0.0
  %1146 = vmatpush1.msra.mxu0 %v1064
  %1147 = vmatprep.subr.mxu0 0.0
  %1148 = vmatpush1.msra.mxu0 0.0
  %1149 = vmatprep.subr.mxu0 0.0
  %1150 = vmatpush1.msra.mxu0 0.0
  %1151 = vmatprep.subr.mxu0 0.0
  %1152 = vmatpush1.msra.mxu0 0.0
  %1153 = vmatprep.subr.mxu0 0.0
  %1154 = vmatpush1.msra.mxu0 0.0
  %1155 = vmatprep.subr.mxu0 0.0
  %1156 = vmatpush1.msra.mxu0 0.0
  %1157 = vmatprep.subr.mxu0 0.0
  %1158 = vmatpush1.msra.mxu0 0.0
  %1159 = vmatprep.subr.mxu0 0.0
  %1160 = vmatpush1.msra.mxu0 0.0
  %1161 = vmatprep.subr.mxu0 0.0
  %1162 = vmatpush1.msra.mxu0 0.0
  %1163 = vmatprep.subr.mxu0 0.0
  %1164 = vmatpush1.msra.mxu0 0.0
  %1165 = vmatprep.subr.mxu0 0.0
  %1166 = vmatpush1.msra.mxu0 0.0
  %1167 = vmatprep.subr.mxu0 0.0
  %1168 = vmatpush1.msra.mxu0 0.0
  %1169 = vmatprep.subr.mxu0 0.0
  %1170 = vmatpush1.msra.mxu0 0.0
  %1171 = vmatprep.subr.mxu0 0.0
  %1172 = vmatpush1.msra.mxu0 0.0
  %1173 = vmatprep.subr.mxu0 0.0
  %1174 = vmatpush1.msra.mxu0 0.0
  %1175 = vmatprep.subr.mxu0 0.0
  %1176 = vmatpush1.msra.mxu0 0.0
  %1177 = vmatprep.subr.mxu0 0.0
  %1178 = vmatpush1.msra.mxu0 0.0
  %1179 = vmatprep.subr.mxu0 0.0
  %1180 = vmatpush1.msra.mxu0 0.0
  %1181 = vmatprep.subr.mxu0 0.0
  %1182 = vmatpush1.msra.mxu0 0.0
  %1183 = vmatprep.subr.mxu0 0.0
  %1184 = vmatpush1.msra.mxu0 0.0
  %1185 = vmatprep.subr.mxu0 0.0
  %1186 = vmatpush1.msra.mxu0 0.0
  %1187 = vmatprep.subr.mxu0 0.0
  %1188 = vmatpush1.msra.mxu0 0.0
  %1189 = vmatprep.subr.mxu0 0.0
  %1190 = vmatpush1.msra.mxu0 0.0
  %1191 = vmatprep.subr.mxu0 0.0
  %1192 = vmatpush1.msra.mxu0 0.0
  %1193 = vmatprep.subr.mxu0 0.0
  %1194 = vmatpush1.msra.mxu0 0.0
  %1195 = vmatprep.subr.mxu0 0.0
  %1196 = vmatpush1.msra.mxu0 0.0
  %1197 = vmatprep.subr.mxu0 0.0
  %1198 = vmatpush1.msra.mxu0 0.0
  %1199 = vmatprep.subr.mxu0 0.0
  %1200 = vmatpush1.msra.mxu0 0.0
  %1201 = vmatprep.subr.mxu0 0.0
  %1202 = vmatpush1.msra.mxu0 0.0
  %1203 = vmatprep.subr.mxu0 0.0
  %1204 = vmatpush1.msra.mxu0 0.0
  %1205 = vmatprep.subr.mxu0 0.0
  %1206 = vmatpush1.msra.mxu0 0.0
  %1207 = vmatprep.subr.mxu0 0.0
  %1208 = vmatpush1.msra.mxu0 0.0
  %1209 = vmatprep.mubr.f32.mxu0 0.0
  %1210 = vmatmul.mubr.f32.gmra.mrb[0].mxu0 %v682
  %v1211 = vpop.f32.mrb[0].mxu0
  %v1212 = vadd.f32 %v1073, %v1211
  %v1213 = vpop.f32.mrb[0].mxu0
  %1214 = vdwg.mxu0
  %1215 = vmatprep.subr.mxu0 0.0
  %1216 = vmatpush1.msra.mxu0 %v1064
  %1217 = vmatprep.subr.mxu0 0.0
  %1218 = vmatpush1.msra.mxu0 0.0
  %1219 = vmatprep.subr.mxu0 0.0
  %1220 = vmatpush1.msra.mxu0 0.0
  %1221 = vmatprep.subr.mxu0 0.0
  %1222 = vmatpush1.msra.mxu0 0.0
  %1223 = vmatprep.subr.mxu0 0.0
  %1224 = vmatpush1.msra.mxu0 0.0
  %1225 = vmatprep.subr.mxu0 0.0
  %1226 = vmatpush1.msra.mxu0 0.0
  %1227 = vmatprep.subr.mxu0 0.0
  %1228 = vmatpush1.msra.mxu0 0.0
  %1229 = vmatprep.subr.mxu0 0.0
  %1230 = vmatpush1.msra.mxu0 0.0
  %1231 = vmatprep.subr.mxu0 0.0
  %1232 = vmatpush1.msra.mxu0 0.0
  %1233 = vmatprep.subr.mxu0 0.0
  %1234 = vmatpush1.msra.mxu0 0.0
  %1235 = vmatprep.subr.mxu0 0.0
  %1236 = vmatpush1.msra.mxu0 0.0
  %1237 = vmatprep.subr.mxu0 0.0
  %1238 = vmatpush1.msra.mxu0 0.0
  %1239 = vmatprep.subr.mxu0 0.0
  %1240 = vmatpush1.msra.mxu0 0.0
  %1241 = vmatprep.subr.mxu0 0.0
  %1242 = vmatpush1.msra.mxu0 0.0
  %1243 = vmatprep.subr.mxu0 0.0
  %1244 = vmatpush1.msra.mxu0 0.0
  %1245 = vmatprep.subr.mxu0 0.0
  %1246 = vmatpush1.msra.mxu0 0.0
  %1247 = vmatprep.subr.mxu0 0.0
  %1248 = vmatpush1.msra.mxu0 0.0
  %1249 = vmatprep.subr.mxu0 0.0
  %1250 = vmatpush1.msra.mxu0 0.0
  %1251 = vmatprep.subr.mxu0 0.0
  %1252 = vmatpush1.msra.mxu0 0.0
  %1253 = vmatprep.subr.mxu0 0.0
  %1254 = vmatpush1.msra.mxu0 0.0
  %1255 = vmatprep.subr.mxu0 0.0
  %1256 = vmatpush1.msra.mxu0 0.0
  %1257 = vmatprep.subr.mxu0 0.0
  %1258 = vmatpush1.msra.mxu0 0.0
  %1259 = vmatprep.subr.mxu0 0.0
  %1260 = vmatpush1.msra.mxu0 0.0
  %1261 = vmatprep.subr.mxu0 0.0
  %1262 = vmatpush1.msra.mxu0 0.0
  %1263 = vmatprep.subr.mxu0 0.0
  %1264 = vmatpush1.msra.mxu0 0.0
  %1265 = vmatprep.subr.mxu0 0.0
  %1266 = vmatpush1.msra.mxu0 0.0
  %1267 = vmatprep.subr.mxu0 0.0
  %1268 = vmatpush1.msra.mxu0 0.0
  %1269 = vmatprep.subr.mxu0 0.0
  %1270 = vmatpush1.msra.mxu0 0.0
  %1271 = vmatprep.subr.mxu0 0.0
  %1272 = vmatpush1.msra.mxu0 0.0
  %1273 = vmatprep.subr.mxu0 0.0
  %1274 = vmatpush1.msra.mxu0 0.0
  %1275 = vmatprep.subr.mxu0 0.0
  %1276 = vmatpush1.msra.mxu0 0.0
  %1277 = vmatprep.subr.mxu0 0.0
  %1278 = vmatpush1.msra.mxu0 0.0
  %1279 = vmatprep.mubr.f32.mxu0 0.0
  %1280 = vmatmul.mubr.f32.gmra.mrb[0].mxu0 %v778
  %v1281 = vpop.f32.mrb[0].mxu0
  %v1282 = vadd.f32 %v1073, %v1281
  %v1283 = vpop.f32.mrb[0].mxu0
  %1284 = vdwg.mxu0
  %1285 = vmatprep.subr.mxu0 0.0
  %1286 = vmatpush1.msra.mxu0 %v1064
  %1287 = vmatprep.subr.mxu0 0.0
  %1288 = vmatpush1.msra.mxu0 0.0
  %1289 = vmatprep.subr.mxu0 0.0
  %1290 = vmatpush1.msra.mxu0 0.0
  %1291 = vmatprep.subr.mxu0 0.0
  %1292 = vmatpush1.msra.mxu0 0.0
  %1293 = vmatprep.subr.mxu0 0.0
  %1294 = vmatpush1.msra.mxu0 0.0
  %1295 = vmatprep.subr.mxu0 0.0
  %1296 = vmatpush1.msra.mxu0 0.0
  %1297 = vmatprep.subr.mxu0 0.0
  %1298 = vmatpush1.msra.mxu0 0.0
  %1299 = vmatprep.subr.mxu0 0.0
  %1300 = vmatpush1.msra.mxu0 0.0
  %1301 = vmatprep.subr.mxu0 0.0
  %1302 = vmatpush1.msra.mxu0 0.0
  %1303 = vmatprep.subr.mxu0 0.0
  %1304 = vmatpush1.msra.mxu0 0.0
  %1305 = vmatprep.subr.mxu0 0.0
  %1306 = vmatpush1.msra.mxu0 0.0
  %1307 = vmatprep.subr.mxu0 0.0
  %1308 = vmatpush1.msra.mxu0 0.0
  %1309 = vmatprep.subr.mxu0 0.0
  %1310 = vmatpush1.msra.mxu0 0.0
  %1311 = vmatprep.subr.mxu0 0.0
  %1312 = vmatpush1.msra.mxu0 0.0
  %1313 = vmatprep.subr.mxu0 0.0
  %1314 = vmatpush1.msra.mxu0 0.0
  %1315 = vmatprep.subr.mxu0 0.0
  %1316 = vmatpush1.msra.mxu0 0.0
  %1317 = vmatprep.subr.mxu0 0.0
  %1318 = vmatpush1.msra.mxu0 0.0
  %1319 = vmatprep.subr.mxu0 0.0
  %1320 = vmatpush1.msra.mxu0 0.0
  %1321 = vmatprep.subr.mxu0 0.0
  %1322 = vmatpush1.msra.mxu0 0.0
  %1323 = vmatprep.subr.mxu0 0.0
  %1324 = vmatpush1.msra.mxu0 0.0
  %1325 = vmatprep.subr.mxu0 0.0
  %1326 = vmatpush1.msra.mxu0 0.0
  %1327 = vmatprep.subr.mxu0 0.0
  %1328 = vmatpush1.msra.mxu0 0.0
  %1329 = vmatprep.subr.mxu0 0.0
  %1330 = vmatpush1.msra.mxu0 0.0
  %1331 = vmatprep.subr.mxu0 0.0
  %1332 = vmatpush1.msra.mxu0 0.0
  %1333 = vmatprep.subr.mxu0 0.0
  %1334 = vmatpush1.msra.mxu0 0.0
  %1335 = vmatprep.subr.mxu0 0.0
  %1336 = vmatpush1.msra.mxu0 0.0
  %1337 = vmatprep.subr.mxu0 0.0
  %1338 = vmatpush1.msra.mxu0 0.0
  %1339 = vmatprep.subr.mxu0 0.0
  %1340 = vmatpush1.msra.mxu0 0.0
  %1341 = vmatprep.subr.mxu0 0.0
  %1342 = vmatpush1.msra.mxu0 0.0
  %1343 = vmatprep.subr.mxu0 0.0
  %1344 = vmatpush1.msra.mxu0 0.0
  %1345 = vmatprep.subr.mxu0 0.0
  %1346 = vmatpush1.msra.mxu0 0.0
  %1347 = vmatprep.subr.mxu0 0.0
  %1348 = vmatpush1.msra.mxu0 0.0
  %1349 = vmatprep.mubr.f32.mxu0 0.0
  %1350 = vmatmul.mubr.f32.gmra.mrb[0].mxu0 %v874
  %v1351 = vpop.f32.mrb[0].mxu0
  %v1352 = vadd.f32 %v1073, %v1351
  %v1353 = vpop.f32.mrb[0].mxu0
  %1354 = vdwg.mxu0
  %1355 = vmatprep.subr.mxu0 0.0
  %1356 = vmatpush1.msra.mxu0 %v1064
  %1357 = vmatprep.subr.mxu0 0.0
  %1358 = vmatpush1.msra.mxu0 0.0
  %1359 = vmatprep.subr.mxu0 0.0
  %1360 = vmatpush1.msra.mxu0 0.0
  %1361 = vmatprep.subr.mxu0 0.0
  %1362 = vmatpush1.msra.mxu0 0.0
  %1363 = vmatprep.subr.mxu0 0.0
  %1364 = vmatpush1.msra.mxu0 0.0
  %1365 = vmatprep.subr.mxu0 0.0
  %1366 = vmatpush1.msra.mxu0 0.0
  %1367 = vmatprep.subr.mxu0 0.0
  %1368 = vmatpush1.msra.mxu0 0.0
  %1369 = vmatprep.subr.mxu0 0.0
  %1370 = vmatpush1.msra.mxu0 0.0
  %1371 = vmatprep.subr.mxu0 0.0
  %1372 = vmatpush1.msra.mxu0 0.0
  %1373 = vmatprep.subr.mxu0 0.0
  %1374 = vmatpush1.msra.mxu0 0.0
  %1375 = vmatprep.subr.mxu0 0.0
  %1376 = vmatpush1.msra.mxu0 0.0
  %1377 = vmatprep.subr.mxu0 0.0
  %1378 = vmatpush1.msra.mxu0 0.0
  %1379 = vmatprep.subr.mxu0 0.0
  %1380 = vmatpush1.msra.mxu0 0.0
  %1381 = vmatprep.subr.mxu0 0.0
  %1382 = vmatpush1.msra.mxu0 0.0
  %1383 = vmatprep.subr.mxu0 0.0
  %1384 = vmatpush1.msra.mxu0 0.0
  %1385 = vmatprep.subr.mxu0 0.0
  %1386 = vmatpush1.msra.mxu0 0.0
  %1387 = vmatprep.subr.mxu0 0.0
  %1388 = vmatpush1.msra.mxu0 0.0
  %1389 = vmatprep.subr.mxu0 0.0
  %1390 = vmatpush1.msra.mxu0 0.0
  %1391 = vmatprep.subr.mxu0 0.0
  %1392 = vmatpush1.msra.mxu0 0.0
  %1393 = vmatprep.subr.mxu0 0.0
  %1394 = vmatpush1.msra.mxu0 0.0
  %1395 = vmatprep.subr.mxu0 0.0
  %1396 = vmatpush1.msra.mxu0 0.0
  %1397 = vmatprep.subr.mxu0 0.0
  %1398 = vmatpush1.msra.mxu0 0.0
  %1399 = vmatprep.subr.mxu0 0.0
  %1400 = vmatpush1.msra.mxu0 0.0
  %1401 = vmatprep.subr.mxu0 0.0
  %1402 = vmatpush1.msra.mxu0 0.0
  %1403 = vmatprep.subr.mxu0 0.0
  %1404 = vmatpush1.msra.mxu0 0.0
  %1405 = vmatprep.subr.mxu0 0.0
  %1406 = vmatpush1.msra.mxu0 0.0
  %1407 = vmatprep.subr.mxu0 0.0
  %1408 = vmatpush1.msra.mxu0 0.0
  %1409 = vmatprep.subr.mxu0 0.0
  %1410 = vmatpush1.msra.mxu0 0.0
  %1411 = vmatprep.subr.mxu0 0.0
  %1412 = vmatpush1.msra.mxu0 0.0
  %1413 = vmatprep.subr.mxu0 0.0
  %1414 = vmatpush1.msra.mxu0 0.0
  %1415 = vmatprep.subr.mxu0 0.0
  %1416 = vmatpush1.msra.mxu0 0.0
  %1417 = vmatprep.subr.mxu0 0.0
  %1418 = vmatpush1.msra.mxu0 0.0
  %1419 = vmatprep.mubr.f32.mxu0 0.0
  %1420 = vmatmul.mubr.f32.gmra.mrb[0].mxu0 %v970
  %v1421 = vpop.f32.mrb[0].mxu0
  %v1422 = vadd.f32 %v1073, %v1421
  %v1423 = vpop.f32.mrb[0].mxu0
  %1424 = vdwg.mxu0
  %1426 = vrot.lane.b32.xlu0 %v1062, 104
  %v1427 = vpop.permute.xlu0 %1426
  %v1428 = vsel %vm488, %v1427, 0
  %1430 = vmatprep.subr.mxu0 0.0
  %1431 = vmatpush1.msra.mxu0 %v1064
  %1432 = vmatprep.subr.mxu0 0.0
  %1433 = vmatpush1.msra.mxu0 0.0
  %1434 = vmatprep.subr.mxu0 0.0
  %1435 = vmatpush1.msra.mxu0 0.0
  %1436 = vmatprep.subr.mxu0 0.0
  %1437 = vmatpush1.msra.mxu0 0.0
  %1438 = vmatprep.subr.mxu0 0.0
  %1439 = vmatpush1.msra.mxu0 0.0
  %1440 = vmatprep.subr.mxu0 0.0
  %1441 = vmatpush1.msra.mxu0 0.0
  %1442 = vmatprep.subr.mxu0 0.0
  %1443 = vmatpush1.msra.mxu0 0.0
  %1444 = vmatprep.subr.mxu0 0.0
  %1445 = vmatpush1.msra.mxu0 0.0
  %1446 = vmatprep.subr.mxu0 0.0
  %1447 = vmatpush1.msra.mxu0 0.0
  %1448 = vmatprep.subr.mxu0 0.0
  %1449 = vmatpush1.msra.mxu0 0.0
  %1450 = vmatprep.subr.mxu0 0.0
  %1451 = vmatpush1.msra.mxu0 0.0
  %1452 = vmatprep.subr.mxu0 0.0
  %1453 = vmatpush1.msra.mxu0 0.0
  %1454 = vmatprep.subr.mxu0 0.0
  %1455 = vmatpush1.msra.mxu0 0.0
  %1456 = vmatprep.subr.mxu0 0.0
  %1457 = vmatpush1.msra.mxu0 0.0
  %1458 = vmatprep.subr.mxu0 0.0
  %1459 = vmatpush1.msra.mxu0 0.0
  %1460 = vmatprep.subr.mxu0 0.0
  %1461 = vmatpush1.msra.mxu0 0.0
  %1462 = vmatprep.subr.mxu0 0.0
  %1463 = vmatpush1.msra.mxu0 0.0
  %1464 = vmatprep.subr.mxu0 0.0
  %1465 = vmatpush1.msra.mxu0 0.0
  %1466 = vmatprep.subr.mxu0 0.0
  %1467 = vmatpush1.msra.mxu0 0.0
  %1468 = vmatprep.subr.mxu0 0.0
  %1469 = vmatpush1.msra.mxu0 0.0
  %1470 = vmatprep.subr.mxu0 0.0
  %1471 = vmatpush1.msra.mxu0 0.0
  %1472 = vmatprep.subr.mxu0 0.0
  %1473 = vmatpush1.msra.mxu0 0.0
  %1474 = vmatprep.subr.mxu0 0.0
  %1475 = vmatpush1.msra.mxu0 0.0
  %1476 = vmatprep.subr.mxu0 0.0
  %1477 = vmatpush1.msra.mxu0 0.0
  %1478 = vmatprep.subr.mxu0 0.0
  %1479 = vmatpush1.msra.mxu0 0.0
  %1480 = vmatprep.subr.mxu0 0.0
  %1481 = vmatpush1.msra.mxu0 0.0
  %1482 = vmatprep.subr.mxu0 0.0
  %1483 = vmatpush1.msra.mxu0 0.0
  %1484 = vmatprep.subr.mxu0 0.0
  %1485 = vmatpush1.msra.mxu0 0.0
  %1486 = vmatprep.subr.mxu0 0.0
  %1487 = vmatpush1.msra.mxu0 0.0
  %1488 = vmatprep.subr.mxu0 0.0
  %1489 = vmatpush1.msra.mxu0 0.0
  %1490 = vmatprep.subr.mxu0 0.0
  %1491 = vmatpush1.msra.mxu0 0.0
  %1492 = vmatprep.subr.mxu0 0.0
  %1493 = vmatpush1.msra.mxu0 0.0
  %1494 = vmatprep.mubr.f32.mxu0 0.0
  %1495 = vmatmul.mubr.f32.gmra.mrb[0].mxu0 %v1428
  %v1496 = vpop.f32.mrb[0].mxu0
  %v1497 = vadd.f32 %v1073, %v1496
  %v1498 = vpop.f32.mrb[0].mxu0
  %1499 = vdwg.mxu0
  %1500 = vmatprep.subr.mxu0 0.0
  %1501 = vmatpush1.msra.mxu0 %v1066
  %1502 = vmatprep.subr.mxu0 0.0
  %1503 = vmatpush1.msra.mxu0 0.0
  %1504 = vmatprep.subr.mxu0 0.0
  %1505 = vmatpush1.msra.mxu0 0.0
  %1506 = vmatprep.subr.mxu0 0.0
  %1507 = vmatpush1.msra.mxu0 0.0
  %1508 = vmatprep.subr.mxu0 0.0
  %1509 = vmatpush1.msra.mxu0 0.0
  %1510 = vmatprep.subr.mxu0 0.0
  %1511 = vmatpush1.msra.mxu0 0.0
  %1512 = vmatprep.subr.mxu0 0.0
  %1513 = vmatpush1.msra.mxu0 0.0
  %1514 = vmatprep.subr.mxu0 0.0
  %1515 = vmatpush1.msra.mxu0 0.0
  %1516 = vmatprep.subr.mxu0 0.0
  %1517 = vmatpush1.msra.mxu0 0.0
  %1518 = vmatprep.subr.mxu0 0.0
  %1519 = vmatpush1.msra.mxu0 0.0
  %1520 = vmatprep.subr.mxu0 0.0
  %1521 = vmatpush1.msra.mxu0 0.0
  %1522 = vmatprep.subr.mxu0 0.0
  %1523 = vmatpush1.msra.mxu0 0.0
  %1524 = vmatprep.subr.mxu0 0.0
  %1525 = vmatpush1.msra.mxu0 0.0
  %1526 = vmatprep.subr.mxu0 0.0
  %1527 = vmatpush1.msra.mxu0 0.0
  %1528 = vmatprep.subr.mxu0 0.0
  %1529 = vmatpush1.msra.mxu0 0.0
  %1530 = vmatprep.subr.mxu0 0.0
  %1531 = vmatpush1.msra.mxu0 0.0
  %1532 = vmatprep.subr.mxu0 0.0
  %1533 = vmatpush1.msra.mxu0 0.0
  %1534 = vmatprep.subr.mxu0 0.0
  %1535 = vmatpush1.msra.mxu0 0.0
  %1536 = vmatprep.subr.mxu0 0.0
  %1537 = vmatpush1.msra.mxu0 0.0
  %1538 = vmatprep.subr.mxu0 0.0
  %1539 = vmatpush1.msra.mxu0 0.0
  %1540 = vmatprep.subr.mxu0 0.0
  %1541 = vmatpush1.msra.mxu0 0.0
  %1542 = vmatprep.subr.mxu0 0.0
  %1543 = vmatpush1.msra.mxu0 0.0
  %1544 = vmatprep.subr.mxu0 0.0
  %1545 = vmatpush1.msra.mxu0 0.0
  %1546 = vmatprep.subr.mxu0 0.0
  %1547 = vmatpush1.msra.mxu0 0.0
  %1548 = vmatprep.subr.mxu0 0.0
  %1549 = vmatpush1.msra.mxu0 0.0
  %1550 = vmatprep.subr.mxu0 0.0
  %1551 = vmatpush1.msra.mxu0 0.0
  %1552 = vmatprep.subr.mxu0 0.0
  %1553 = vmatpush1.msra.mxu0 0.0
  %1554 = vmatprep.subr.mxu0 0.0
  %1555 = vmatpush1.msra.mxu0 0.0
  %1556 = vmatprep.subr.mxu0 0.0
  %1557 = vmatpush1.msra.mxu0 0.0
  %1558 = vmatprep.subr.mxu0 0.0
  %1559 = vmatpush1.msra.mxu0 0.0
  %1560 = vmatprep.subr.mxu0 0.0
  %1561 = vmatpush1.msra.mxu0 0.0
  %1562 = vmatprep.subr.mxu0 0.0
  %1563 = vmatpush1.msra.mxu0 0.0
  %1564 = vmatprep.mubr.f32.mxu0 0.0
  %1565 = vmatmul.mubr.f32.gmra.mrb[0].mxu0 %v490
  %v1566 = vpop.f32.mrb[0].mxu0
  %v1567 = vadd.f32 0.0, %v1566
  %v1568 = vpop.f32.mrb[0].mxu0
  %1569 = vdwg.mxu0
  %v1570 = vadd.f32 %v1142, %v1567
  %v1571 = vtanh.pop %v1570
  %v1572 = vmul.f32 %v1571, %v28
  %v1573 = vadd.f32 %v1572, %v29
  %v1574 = vmul.f32 %v1573, 0.0
  %1576 = vrot.lane.b32.xlu0 %v1573, 112
  %v1577 = vpop.permute.xlu0 %1576
  %v1579 = vmul.f32 %v1573, %v1577
  %1581 = vrot.lane.b32.xlu0 %v1579, 8
  %v1582 = vpop.permute.xlu0 %1581
  %v1584 = vadd.f32 %v1574, %v1582
  %v1585 = vtanh.pop %v1584
  %1587 = vrot.lane.b32.xlu0 %v1585, 16
  %v1588 = vpop.permute.xlu0 %1587
  %v1590 = vmul.f32 %v1573, %v1588
  %1592 = vrot.lane.b32.xlu0 %v1590, 104
  %v1593 = vpop.permute.xlu0 %1592
  %v1594 = vsel %vm488, %v1593, 0
  %1596 = vmatprep.subr.mxu0 0.0
  %1597 = vmatpush1.msra.mxu0 %v1066
  %1598 = vmatprep.subr.mxu0 0.0
  %1599 = vmatpush1.msra.mxu0 0.0
  %1600 = vmatprep.subr.mxu0 0.0
  %1601 = vmatpush1.msra.mxu0 0.0
  %1602 = vmatprep.subr.mxu0 0.0
  %1603 = vmatpush1.msra.mxu0 0.0
  %1604 = vmatprep.subr.mxu0 0.0
  %1605 = vmatpush1.msra.mxu0 0.0
  %1606 = vmatprep.subr.mxu0 0.0
  %1607 = vmatpush1.msra.mxu0 0.0
  %1608 = vmatprep.subr.mxu0 0.0
  %1609 = vmatpush1.msra.mxu0 0.0
  %1610 = vmatprep.subr.mxu0 0.0
  %1611 = vmatpush1.msra.mxu0 0.0
  %1612 = vmatprep.subr.mxu0 0.0
  %1613 = vmatpush1.msra.mxu0 0.0
  %1614 = vmatprep.subr.mxu0 0.0
  %1615 = vmatpush1.msra.mxu0 0.0
  %1616 = vmatprep.subr.mxu0 0.0
  %1617 = vmatpush1.msra.mxu0 0.0
  %1618 = vmatprep.subr.mxu0 0.0
  %1619 = vmatpush1.msra.mxu0 0.0
  %1620 = vmatprep.subr.mxu0 0.0
  %1621 = vmatpush1.msra.mxu0 0.0
  %1622 = vmatprep.subr.mxu0 0.0
  %1623 = vmatpush1.msra.mxu0 0.0
  %1624 = vmatprep.subr.mxu0 0.0
  %1625 = vmatpush1.msra.mxu0 0.0
  %1626 = vmatprep.subr.mxu0 0.0
  %1627 = vmatpush1.msra.mxu0 0.0
  %1628 = vmatprep.subr.mxu0 0.0
  %1629 = vmatpush1.msra.mxu0 0.0
  %1630 = vmatprep.subr.mxu0 0.0
  %1631 = vmatpush1.msra.mxu0 0.0
  %1632 = vmatprep.subr.mxu0 0.0
  %1633 = vmatpush1.msra.mxu0 0.0
  %1634 = vmatprep.subr.mxu0 0.0
  %1635 = vmatpush1.msra.mxu0 0.0
  %1636 = vmatprep.subr.mxu0 0.0
  %1637 = vmatpush1.msra.mxu0 0.0
  %1638 = vmatprep.subr.mxu0 0.0
  %1639 = vmatpush1.msra.mxu0 0.0
  %1640 = vmatprep.subr.mxu0 0.0
  %1641 = vmatpush1.msra.mxu0 0.0
  %1642 = vmatprep.subr.mxu0 0.0
  %1643 = vmatpush1.msra.mxu0 0.0
  %1644 = vmatprep.subr.mxu0 0.0
  %1645 = vmatpush1.msra.mxu0 0.0
  %1646 = vmatprep.subr.mxu0 0.0
  %1647 = vmatpush1.msra.mxu0 0.0
  %1648 = vmatprep.subr.mxu0 0.0
  %1649 = vmatpush1.msra.mxu0 0.0
  %1650 = vmatprep.subr.mxu0 0.0
  %1651 = vmatpush1.msra.mxu0 0.0
  %1652 = vmatprep.subr.mxu0 0.0
  %1653 = vmatpush1.msra.mxu0 0.0
  %1654 = vmatprep.subr.mxu0 0.0
  %1655 = vmatpush1.msra.mxu0 0.0
  %1656 = vmatprep.subr.mxu0 0.0
  %1657 = vmatpush1.msra.mxu0 0.0
  %1658 = vmatprep.subr.mxu0 0.0
  %1659 = vmatpush1.msra.mxu0 0.0
  %1660 = vmatprep.mubr.f32.mxu0 0.0
  %1661 = vmatmul.mubr.f32.gmra.mrb[0].mxu0 %v1594
  %v1662 = vpop.f32.mrb[0].mxu0
  %v1663 = vadd.f32 0.0, %v1662
  %v1664 = vpop.f32.mrb[0].mxu0
  %1665 = vdwg.mxu0
  %v1666 = vadd.f32 %v1212, %v1663
  %v1667 = vtanh.pop %v1666
  %v1668 = vmul.f32 %v1667, %v28
  %v1669 = vadd.f32 %v1668, %v29
  %v1670 = vmul.f32 %v1669, %v1584
  %1672 = vrot.lane.b32.xlu0 %v1669, 112
  %v1673 = vpop.permute.xlu0 %1672
  %v1675 = vmul.f32 %v1669, %v1673
  %1677 = vrot.lane.b32.xlu0 %v1675, 8
  %v1678 = vpop.permute.xlu0 %1677
  %v1680 = vadd.f32 %v1670, %v1678
  %v1681 = vtanh.pop %v1680
  %1683 = vrot.lane.b32.xlu0 %v1681, 16
  %v1684 = vpop.permute.xlu0 %1683
  %v1686 = vmul.f32 %v1669, %v1684
  %1688 = vrot.lane.b32.xlu0 %v1686, 104
  %v1689 = vpop.permute.xlu0 %1688
  %v1690 = vsel %vm488, %v1689, 0
  %1692 = vmatprep.subr.mxu0 0.0
  %1693 = vmatpush1.msra.mxu0 %v1066
  %1694 = vmatprep.subr.mxu0 0.0
  %1695 = vmatpush1.msra.mxu0 0.0
  %1696 = vmatprep.subr.mxu0 0.0
  %1697 = vmatpush1.msra.mxu0 0.0
  %1698 = vmatprep.subr.mxu0 0.0
  %1699 = vmatpush1.msra.mxu0 0.0
  %1700 = vmatprep.subr.mxu0 0.0
  %1701 = vmatpush1.msra.mxu0 0.0
  %1702 = vmatprep.subr.mxu0 0.0
  %1703 = vmatpush1.msra.mxu0 0.0
  %1704 = vmatprep.subr.mxu0 0.0
  %1705 = vmatpush1.msra.mxu0 0.0
  %1706 = vmatprep.subr.mxu0 0.0
  %1707 = vmatpush1.msra.mxu0 0.0
  %1708 = vmatprep.subr.mxu0 0.0
  %1709 = vmatpush1.msra.mxu0 0.0
  %1710 = vmatprep.subr.mxu0 0.0
  %1711 = vmatpush1.msra.mxu0 0.0
  %1712 = vmatprep.subr.mxu0 0.0
  %1713 = vmatpush1.msra.mxu0 0.0
  %1714 = vmatprep.subr.mxu0 0.0
  %1715 = vmatpush1.msra.mxu0 0.0
  %1716 = vmatprep.subr.mxu0 0.0
  %1717 = vmatpush1.msra.mxu0 0.0
  %1718 = vmatprep.subr.mxu0 0.0
  %1719 = vmatpush1.msra.mxu0 0.0
  %1720 = vmatprep.subr.mxu0 0.0
  %1721 = vmatpush1.msra.mxu0 0.0
  %1722 = vmatprep.subr.mxu0 0.0
  %1723 = vmatpush1.msra.mxu0 0.0
  %1724 = vmatprep.subr.mxu0 0.0
  %1725 = vmatpush1.msra.mxu0 0.0
  %1726 = vmatprep.subr.mxu0 0.0
  %1727 = vmatpush1.msra.mxu0 0.0
  %1728 = vmatprep.subr.mxu0 0.0
  %1729 = vmatpush1.msra.mxu0 0.0
  %1730 = vmatprep.subr.mxu0 0.0
  %1731 = vmatpush1.msra.mxu0 0.0
  %1732 = vmatprep.subr.mxu0 0.0
  %1733 = vmatpush1.msra.mxu0 0.0
  %1734 = vmatprep.subr.mxu0 0.0
  %1735 = vmatpush1.msra.mxu0 0.0
  %1736 = vmatprep.subr.mxu0 0.0
  %1737 = vmatpush1.msra.mxu0 0.0
  %1738 = vmatprep.subr.mxu0 0.0
  %1739 = vmatpush1.msra.mxu0 0.0
  %1740 = vmatprep.subr.mxu0 0.0
  %1741 = vmatpush1.msra.mxu0 0.0
  %1742 = vmatprep.subr.mxu0 0.0
  %1743 = vmatpush1.msra.mxu0 0.0
  %1744 = vmatprep.subr.mxu0 0.0
  %1745 = vmatpush1.msra.mxu0 0.0
  %1746 = vmatprep.subr.mxu0 0.0
  %1747 = vmatpush1.msra.mxu0 0.0
  %1748 = vmatprep.subr.mxu0 0.0
  %1749 = vmatpush1.msra.mxu0 0.0
  %1750 = vmatprep.subr.mxu0 0.0
  %1751 = vmatpush1.msra.mxu0 0.0
  %1752 = vmatprep.subr.mxu0 0.0
  %1753 = vmatpush1.msra.mxu0 0.0
  %1754 = vmatprep.subr.mxu0 0.0
  %1755 = vmatpush1.msra.mxu0 0.0
  %1756 = vmatprep.mubr.f32.mxu0 0.0
  %1757 = vmatmul.mubr.f32.gmra.mrb[0].mxu0 %v1690
  %v1758 = vpop.f32.mrb[0].mxu0
  %v1759 = vadd.f32 0.0, %v1758
  %v1760 = vpop.f32.mrb[0].mxu0
  %1761 = vdwg.mxu0
  %v1762 = vadd.f32 %v1282, %v1759
  %v1763 = vtanh.pop %v1762
  %v1764 = vmul.f32 %v1763, %v28
  %v1765 = vadd.f32 %v1764, %v29
  %v1766 = vmul.f32 %v1765, %v1680
  %1768 = vrot.lane.b32.xlu0 %v1765, 112
  %v1769 = vpop.permute.xlu0 %1768
  %v1771 = vmul.f32 %v1765, %v1769
  %1773 = vrot.lane.b32.xlu0 %v1771, 8
  %v1774 = vpop.permute.xlu0 %1773
  %v1776 = vadd.f32 %v1766, %v1774
  %v1777 = vtanh.pop %v1776
  %1779 = vrot.lane.b32.xlu0 %v1777, 16
  %v1780 = vpop.permute.xlu0 %1779
  %v1782 = vmul.f32 %v1765, %v1780
  %1784 = vrot.lane.b32.xlu0 %v1782, 104
  %v1785 = vpop.permute.xlu0 %1784
  %v1786 = vsel %vm488, %v1785, 0
  %1788 = vmatprep.subr.mxu0 0.0
  %1789 = vmatpush1.msra.mxu0 %v1066
  %1790 = vmatprep.subr.mxu0 0.0
  %1791 = vmatpush1.msra.mxu0 0.0
  %1792 = vmatprep.subr.mxu0 0.0
  %1793 = vmatpush1.msra.mxu0 0.0
  %1794 = vmatprep.subr.mxu0 0.0
  %1795 = vmatpush1.msra.mxu0 0.0
  %1796 = vmatprep.subr.mxu0 0.0
  %1797 = vmatpush1.msra.mxu0 0.0
  %1798 = vmatprep.subr.mxu0 0.0
  %1799 = vmatpush1.msra.mxu0 0.0
  %1800 = vmatprep.subr.mxu0 0.0
  %1801 = vmatpush1.msra.mxu0 0.0
  %1802 = vmatprep.subr.mxu0 0.0
  %1803 = vmatpush1.msra.mxu0 0.0
  %1804 = vmatprep.subr.mxu0 0.0
  %1805 = vmatpush1.msra.mxu0 0.0
  %1806 = vmatprep.subr.mxu0 0.0
  %1807 = vmatpush1.msra.mxu0 0.0
  %1808 = vmatprep.subr.mxu0 0.0
  %1809 = vmatpush1.msra.mxu0 0.0
  %1810 = vmatprep.subr.mxu0 0.0
  %1811 = vmatpush1.msra.mxu0 0.0
  %1812 = vmatprep.subr.mxu0 0.0
  %1813 = vmatpush1.msra.mxu0 0.0
  %1814 = vmatprep.subr.mxu0 0.0
  %1815 = vmatpush1.msra.mxu0 0.0
  %1816 = vmatprep.subr.mxu0 0.0
  %1817 = vmatpush1.msra.mxu0 0.0
  %1818 = vmatprep.subr.mxu0 0.0
  %1819 = vmatpush1.msra.mxu0 0.0
  %1820 = vmatprep.subr.mxu0 0.0
  %1821 = vmatpush1.msra.mxu0 0.0
  %1822 = vmatprep.subr.mxu0 0.0
  %1823 = vmatpush1.msra.mxu0 0.0
  %1824 = vmatprep.subr.mxu0 0.0
  %1825 = vmatpush1.msra.mxu0 0.0
  %1826 = vmatprep.subr.mxu0 0.0
  %1827 = vmatpush1.msra.mxu0 0.0
  %1828 = vmatprep.subr.mxu0 0.0
  %1829 = vmatpush1.msra.mxu0 0.0
  %1830 = vmatprep.subr.mxu0 0.0
  %1831 = vmatpush1.msra.mxu0 0.0
  %1832 = vmatprep.subr.mxu0 0.0
  %1833 = vmatpush1.msra.mxu0 0.0
  %1834 = vmatprep.subr.mxu0 0.0
  %1835 = vmatpush1.msra.mxu0 0.0
  %1836 = vmatprep.subr.mxu0 0.0
  %1837 = vmatpush1.msra.mxu0 0.0
  %1838 = vmatprep.subr.mxu0 0.0
  %1839 = vmatpush1.msra.mxu0 0.0
  %1840 = vmatprep.subr.mxu0 0.0
  %1841 = vmatpush1.msra.mxu0 0.0
  %1842 = vmatprep.subr.mxu0 0.0
  %1843 = vmatpush1.msra.mxu0 0.0
  %1844 = vmatprep.subr.mxu0 0.0
  %1845 = vmatpush1.msra.mxu0 0.0
  %1846 = vmatprep.subr.mxu0 0.0
  %1847 = vmatpush1.msra.mxu0 0.0
  %1848 = vmatprep.subr.mxu0 0.0
  %1849 = vmatpush1.msra.mxu0 0.0
  %1850 = vmatprep.subr.mxu0 0.0
  %1851 = vmatpush1.msra.mxu0 0.0
  %1852 = vmatprep.mubr.f32.mxu0 0.0
  %1853 = vmatmul.mubr.f32.gmra.mrb[0].mxu0 %v1786
  %v1854 = vpop.f32.mrb[0].mxu0
  %v1855 = vadd.f32 0.0, %v1854
  %v1856 = vpop.f32.mrb[0].mxu0
  %1857 = vdwg.mxu0
  %v1858 = vadd.f32 %v1352, %v1855
  %v1859 = vtanh.pop %v1858
  %v1860 = vmul.f32 %v1859, %v28
  %v1861 = vadd.f32 %v1860, %v29
  %v1862 = vmul.f32 %v1861, %v1776
  %1864 = vrot.lane.b32.xlu0 %v1861, 112
  %v1865 = vpop.permute.xlu0 %1864
  %v1867 = vmul.f32 %v1861, %v1865
  %1869 = vrot.lane.b32.xlu0 %v1867, 8
  %v1870 = vpop.permute.xlu0 %1869
  %v1872 = vadd.f32 %v1862, %v1870
  %v1873 = vtanh.pop %v1872
  %1875 = vrot.lane.b32.xlu0 %v1873, 16
  %v1876 = vpop.permute.xlu0 %1875
  %v1878 = vmul.f32 %v1861, %v1876
  %1880 = vrot.lane.b32.xlu0 %v1878, 104
  %v1881 = vpop.permute.xlu0 %1880
  %v1882 = vsel %vm488, %v1881, 0
  %1884 = vmatprep.subr.mxu0 0.0
  %1885 = vmatpush1.msra.mxu0 %v1066
  %1886 = vmatprep.subr.mxu0 0.0
  %1887 = vmatpush1.msra.mxu0 0.0
  %1888 = vmatprep.subr.mxu0 0.0
  %1889 = vmatpush1.msra.mxu0 0.0
  %1890 = vmatprep.subr.mxu0 0.0
  %1891 = vmatpush1.msra.mxu0 0.0
  %1892 = vmatprep.subr.mxu0 0.0
  %1893 = vmatpush1.msra.mxu0 0.0
  %1894 = vmatprep.subr.mxu0 0.0
  %1895 = vmatpush1.msra.mxu0 0.0
  %1896 = vmatprep.subr.mxu0 0.0
  %1897 = vmatpush1.msra.mxu0 0.0
  %1898 = vmatprep.subr.mxu0 0.0
  %1899 = vmatpush1.msra.mxu0 0.0
  %1900 = vmatprep.subr.mxu0 0.0
  %1901 = vmatpush1.msra.mxu0 0.0
  %1902 = vmatprep.subr.mxu0 0.0
  %1903 = vmatpush1.msra.mxu0 0.0
  %1904 = vmatprep.subr.mxu0 0.0
  %1905 = vmatpush1.msra.mxu0 0.0
  %1906 = vmatprep.subr.mxu0 0.0
  %1907 = vmatpush1.msra.mxu0 0.0
  %1908 = vmatprep.subr.mxu0 0.0
  %1909 = vmatpush1.msra.mxu0 0.0
  %1910 = vmatprep.subr.mxu0 0.0
  %1911 = vmatpush1.msra.mxu0 0.0
  %1912 = vmatprep.subr.mxu0 0.0
  %1913 = vmatpush1.msra.mxu0 0.0
  %1914 = vmatprep.subr.mxu0 0.0
  %1915 = vmatpush1.msra.mxu0 0.0
  %1916 = vmatprep.subr.mxu0 0.0
  %1917 = vmatpush1.msra.mxu0 0.0
  %1918 = vmatprep.subr.mxu0 0.0
  %1919 = vmatpush1.msra.mxu0 0.0
  %1920 = vmatprep.subr.mxu0 0.0
  %1921 = vmatpush1.msra.mxu0 0.0
  %1922 = vmatprep.subr.mxu0 0.0
  %1923 = vmatpush1.msra.mxu0 0.0
  %1924 = vmatprep.subr.mxu0 0.0
  %1925 = vmatpush1.msra.mxu0 0.0
  %1926 = vmatprep.subr.mxu0 0.0
  %1927 = vmatpush1.msra.mxu0 0.0
  %1928 = vmatprep.subr.mxu0 0.0
  %1929 = vmatpush1.msra.mxu0 0.0
  %1930 = vmatprep.subr.mxu0 0.0
  %1931 = vmatpush1.msra.mxu0 0.0
  %1932 = vmatprep.subr.mxu0 0.0
  %1933 = vmatpush1.msra.mxu0 0.0
  %1934 = vmatprep.subr.mxu0 0.0
  %1935 = vmatpush1.msra.mxu0 0.0
  %1936 = vmatprep.subr.mxu0 0.0
  %1937 = vmatpush1.msra.mxu0 0.0
  %1938 = vmatprep.subr.mxu0 0.0
  %1939 = vmatpush1.msra.mxu0 0.0
  %1940 = vmatprep.subr.mxu0 0.0
  %1941 = vmatpush1.msra.mxu0 0.0
  %1942 = vmatprep.subr.mxu0 0.0
  %1943 = vmatpush1.msra.mxu0 0.0
  %1944 = vmatprep.subr.mxu0 0.0
  %1945 = vmatpush1.msra.mxu0 0.0
  %1946 = vmatprep.subr.mxu0 0.0
  %1947 = vmatpush1.msra.mxu0 0.0
  %1948 = vmatprep.mubr.f32.mxu0 0.0
  %1949 = vmatmul.mubr.f32.gmra.mrb[0].mxu0 %v1882
  %v1950 = vpop.f32.mrb[0].mxu0
  %v1951 = vadd.f32 0.0, %v1950
  %v1952 = vpop.f32.mrb[0].mxu0
  %1953 = vdwg.mxu0
  %v1954 = vadd.f32 %v1422, %v1951
  %v1955 = vtanh.pop %v1954
  %v1956 = vmul.f32 %v1955, %v28
  %v1957 = vadd.f32 %v1956, %v29
  %v1958 = vmul.f32 %v1957, %v1872
  %1960 = vrot.lane.b32.xlu0 %v1957, 112
  %v1961 = vpop.permute.xlu0 %1960
  %v1963 = vmul.f32 %v1957, %v1961
  %1965 = vrot.lane.b32.xlu0 %v1963, 8
  %v1966 = vpop.permute.xlu0 %1965
  %v1968 = vadd.f32 %v1958, %v1966
  %v1969 = vtanh.pop %v1968
  %1971 = vrot.lane.b32.xlu0 %v1969, 16
  %v1972 = vpop.permute.xlu0 %1971
  %v1974 = vmul.f32 %v1957, %v1972
  %1976 = vrot.lane.b32.xlu0 %v1974, 104
  %v1977 = vpop.permute.xlu0 %1976
  %v1978 = vsel %vm488, %v1977, 0
  %1980 = vmatprep.subr.mxu0 0.0
  %1981 = vmatpush1.msra.mxu0 %v1066
  %1982 = vmatprep.subr.mxu0 0.0
  %1983 = vmatpush1.msra.mxu0 0.0
  %1984 = vmatprep.subr.mxu0 0.0
  %1985 = vmatpush1.msra.mxu0 0.0
  %1986 = vmatprep.subr.mxu0 0.0
  %1987 = vmatpush1.msra.mxu0 0.0
  %1988 = vmatprep.subr.mxu0 0.0
  %1989 = vmatpush1.msra.mxu0 0.0
  %1990 = vmatprep.subr.mxu0 0.0
  %1991 = vmatpush1.msra.mxu0 0.0
  %1992 = vmatprep.subr.mxu0 0.0
  %1993 = vmatpush1.msra.mxu0 0.0
  %1994 = vmatprep.subr.mxu0 0.0
  %1995 = vmatpush1.msra.mxu0 0.0
  %1996 = vmatprep.subr.mxu0 0.0
  %1997 = vmatpush1.msra.mxu0 0.0
  %1998 = vmatprep.subr.mxu0 0.0
  %1999 = vmatpush1.msra.mxu0 0.0
  %2000 = vmatprep.subr.mxu0 0.0
  %2001 = vmatpush1.msra.mxu0 0.0
  %2002 = vmatprep.subr.mxu0 0.0
  %2003 = vmatpush1.msra.mxu0 0.0
  %2004 = vmatprep.subr.mxu0 0.0
  %2005 = vmatpush1.msra.mxu0 0.0
  %2006 = vmatprep.subr.mxu0 0.0
  %2007 = vmatpush1.msra.mxu0 0.0
  %2008 = vmatprep.subr.mxu0 0.0
  %2009 = vmatpush1.msra.mxu0 0.0
  %2010 = vmatprep.subr.mxu0 0.0
  %2011 = vmatpush1.msra.mxu0 0.0
  %2012 = vmatprep.subr.mxu0 0.0
  %2013 = vmatpush1.msra.mxu0 0.0
  %2014 = vmatprep.subr.mxu0 0.0
  %2015 = vmatpush1.msra.mxu0 0.0
  %2016 = vmatprep.subr.mxu0 0.0
  %2017 = vmatpush1.msra.mxu0 0.0
  %2018 = vmatprep.subr.mxu0 0.0
  %2019 = vmatpush1.msra.mxu0 0.0
  %2020 = vmatprep.subr.mxu0 0.0
  %2021 = vmatpush1.msra.mxu0 0.0
  %2022 = vmatprep.subr.mxu0 0.0
  %2023 = vmatpush1.msra.mxu0 0.0
  %2024 = vmatprep.subr.mxu0 0.0
  %2025 = vmatpush1.msra.mxu0 0.0
  %2026 = vmatprep.subr.mxu0 0.0
  %2027 = vmatpush1.msra.mxu0 0.0
  %2028 = vmatprep.subr.mxu0 0.0
  %2029 = vmatpush1.msra.mxu0 0.0
  %2030 = vmatprep.subr.mxu0 0.0
  %2031 = vmatpush1.msra.mxu0 0.0
  %2032 = vmatprep.subr.mxu0 0.0
  %2033 = vmatpush1.msra.mxu0 0.0
  %2034 = vmatprep.subr.mxu0 0.0
  %2035 = vmatpush1.msra.mxu0 0.0
  %2036 = vmatprep.subr.mxu0 0.0
  %2037 = vmatpush1.msra.mxu0 0.0
  %2038 = vmatprep.subr.mxu0 0.0
  %2039 = vmatpush1.msra.mxu0 0.0
  %2040 = vmatprep.subr.mxu0 0.0
  %2041 = vmatpush1.msra.mxu0 0.0
  %2042 = vmatprep.subr.mxu0 0.0
  %2043 = vmatpush1.msra.mxu0 0.0
  %2044 = vmatprep.mubr.f32.mxu0 0.0
  %2045 = vmatmul.mubr.f32.gmra.mrb[0].mxu0 %v1978
  %v2046 = vpop.f32.mrb[0].mxu0
  %v2047 = vadd.f32 0.0, %v2046
  %v2048 = vpop.f32.mrb[0].mxu0
  %2049 = vdwg.mxu0
  %v2050 = vadd.f32 %v1497, %v2047
  %v2051 = vtanh.pop %v2050
  %v2052 = vmul.f32 %v2051, %v28
  %v2053 = vadd.f32 %v2052, %v29
  %v2054 = vmul.f32 %v2053, %v1968
  %2056 = vrot.lane.b32.xlu0 %v2053, 112
  %v2057 = vpop.permute.xlu0 %2056
  %v2059 = vmul.f32 %v2053, %v2057
  %2061 = vrot.lane.b32.xlu0 %v2059, 8
  %v2062 = vpop.permute.xlu0 %2061
  %v2064 = vadd.f32 %v2054, %v2062
  %v2065 = vtanh.pop %v2064
  %2067 = vrot.lane.b32.xlu0 %v2065, 16
  %v2068 = vpop.permute.xlu0 %2067
  %v2070 = vmul.f32 %v2053, %v2068
  %v2071 = vld [vmem:[%s4] sm:$0xff]
  %v2072 = vld [vmem:[%s5] sm:$0x1]
  %v2074 = vlaneseq
  %v2075 = vshrl.u32 %v2074, 7
  %v2076 = vsub.s32 0, %v2075
  %v2077 = vrot.slane %v2072, %v2076
  %2080 = vrot.lane.b32.xlu0 %v2070, 104
  %v2081 = vpop.permute.xlu0 %2080
  %v2082 = vsel %vm488, %v2081, 0
  %2084 = vmatprep.subr.mxu0 0.0
  %2085 = vmatpush1.msra.mxu0 %v2071
  %2086 = vmatprep.subr.mxu0 0.0
  %2087 = vmatpush1.msra.mxu0 0.0
  %2088 = vmatprep.subr.mxu0 0.0
  %2089 = vmatpush1.msra.mxu0 0.0
  %2090 = vmatprep.subr.mxu0 0.0
  %2091 = vmatpush1.msra.mxu0 0.0
  %2092 = vmatprep.subr.mxu0 0.0
  %2093 = vmatpush1.msra.mxu0 0.0
  %2094 = vmatprep.subr.mxu0 0.0
  %2095 = vmatpush1.msra.mxu0 0.0
  %2096 = vmatprep.subr.mxu0 0.0
  %2097 = vmatpush1.msra.mxu0 0.0
  %2098 = vmatprep.subr.mxu0 0.0
  %2099 = vmatpush1.msra.mxu0 0.0
  %2100 = vmatprep.subr.mxu0 0.0
  %2101 = vmatpush1.msra.mxu0 0.0
  %2102 = vmatprep.subr.mxu0 0.0
  %2103 = vmatpush1.msra.mxu0 0.0
  %2104 = vmatprep.subr.mxu0 0.0
  %2105 = vmatpush1.msra.mxu0 0.0
  %2106 = vmatprep.subr.mxu0 0.0
  %2107 = vmatpush1.msra.mxu0 0.0
  %2108 = vmatprep.subr.mxu0 0.0
  %2109 = vmatpush1.msra.mxu0 0.0
  %2110 = vmatprep.subr.mxu0 0.0
  %2111 = vmatpush1.msra.mxu0 0.0
  %2112 = vmatprep.subr.mxu0 0.0
  %2113 = vmatpush1.msra.mxu0 0.0
  %2114 = vmatprep.subr.mxu0 0.0
  %2115 = vmatpush1.msra.mxu0 0.0
  %2116 = vmatprep.subr.mxu0 0.0
  %2117 = vmatpush1.msra.mxu0 0.0
  %2118 = vmatprep.subr.mxu0 0.0
  %2119 = vmatpush1.msra.mxu0 0.0
  %2120 = vmatprep.subr.mxu0 0.0
  %2121 = vmatpush1.msra.mxu0 0.0
  %2122 = vmatprep.subr.mxu0 0.0
  %2123 = vmatpush1.msra.mxu0 0.0
  %2124 = vmatprep.subr.mxu0 0.0
  %2125 = vmatpush1.msra.mxu0 0.0
  %2126 = vmatprep.subr.mxu0 0.0
  %2127 = vmatpush1.msra.mxu0 0.0
  %2128 = vmatprep.subr.mxu0 0.0
  %2129 = vmatpush1.msra.mxu0 0.0
  %2130 = vmatprep.subr.mxu0 0.0
  %2131 = vmatpush1.msra.mxu0 0.0
  %2132 = vmatprep.subr.mxu0 0.0
  %2133 = vmatpush1.msra.mxu0 0.0
  %2134 = vmatprep.subr.mxu0 0.0
  %2135 = vmatpush1.msra.mxu0 0.0
  %2136 = vmatprep.subr.mxu0 0.0
  %2137 = vmatpush1.msra.mxu0 0.0
  %2138 = vmatprep.subr.mxu0 0.0
  %2139 = vmatpush1.msra.mxu0 0.0
  %2140 = vmatprep.subr.mxu0 0.0
  %2141 = vmatpush1.msra.mxu0 0.0
  %2142 = vmatprep.subr.mxu0 0.0
  %2143 = vmatpush1.msra.mxu0 0.0
  %2144 = vmatprep.subr.mxu0 0.0
  %2145 = vmatpush1.msra.mxu0 0.0
  %2146 = vmatprep.subr.mxu0 0.0
  %2147 = vmatpush1.msra.mxu0 0.0
  %2148 = vmatprep.mubr.f32.mxu0 0.0
  %2149 = vmatmul.mubr.f32.gmra.mrb[0].mxu0 %v2082
  %v2150 = vpop.f32.mrb[0].mxu0
  %v2151 = vadd.f32 %v2077, %v2150
  %v2152 = vpop.f32.mrb[0].mxu0
  %2153 = vdwg.mxu0
  %vm2154 = vcmask 11264
  %2155 = vst.msk [vmem:[%s6] sm:$0xf] %vm2154, %v2151
  // Predicated region
  $region26: #{model_forward.1} parent=0 // pred_check
    _
  $region27: #{model_forward.1} parent=0 // pred_check_branch
    %2157 = sbr.rel (0) target = $region29
  $region28: #{model_forward.1} parent=0 // pred_region
    _
  $region29: #{model_forward.1} parent=0 // pred_fallthru
    _
  // Predicated region
  $region30: #{model_forward.1} parent=0 // pred_check
    _
  $region31: #{model_forward.1} parent=0 // pred_check_branch
    %2159 = sbr.rel (0) target = $region33
  $region32: #{model_forward.1} parent=0 // pred_region
    _
  $region33: #{model_forward.1} parent=0 // pred_fallthru
    _

</llo_original>
